<compile_context>
chip_gen: v7x
topology: tpu7x:2x2x1
jax: 0.10.0
libtpu: 0.0.40
codegen_flags: <defaults>
</compile_context>

<pallas_src>
import functools

import jax
import jax.numpy as jnp
import numpy as np
from jax.experimental import pallas as pl
from jax.experimental.pallas import tpu as pltpu


# ----------------------------------- Pallas kernel -----------------------------------

def linear_attention_kernel(x_ref, wq_ref, wk_ref, wv_ref, wo_ref, bo_ref, o_ref, *, heads):
    x = x_ref[0]                                                    # (C, N)

    # to_qkv (1x1 conv, no bias) == channel matmul; weights pre-split q/k/v.
    q = jnp.dot(wq_ref[...], x, preferred_element_type=jnp.float32)   # (hidden, N)
    k = jnp.dot(wk_ref[...], x, preferred_element_type=jnp.float32)   # (hidden, N)
    v = jnp.dot(wv_ref[...], x, preferred_element_type=jnp.float32)   # (hidden, N)

    hidden, n = q.shape
    dh = hidden // heads
    qh = q.reshape(heads, dh, n)      # channel index = head*dh + d  (matches '(qkv heads c)')
    kh = k.reshape(heads, dh, n)
    vh = v.reshape(heads, dh, n)

    # softmax over the spatial axis (lanes) of k.
    km = jnp.max(kh, axis=-1, keepdims=True)
    ke = jnp.exp(kh - km)
    ks = ke / jnp.sum(ke, axis=-1, keepdims=True)

    # contextT[h, e, d] = sum_n v[h, e, n] * k[h, d, n]   (== context[h, d, e] transposed,
    # written so both einsums are canonical batched MXU contractions)
    contextT = jnp.einsum('hen,hdn->hed', vh, ks, preferred_element_type=jnp.float32)
    # out[h, e, n] = sum_d context[h, d, e] * q[h, d, n] = contextT @ q  per head
    out = jnp.einsum('hed,hdn->hen', contextT, qh, preferred_element_type=jnp.float32)
    out = out.reshape(hidden, n)

    # to_out (1x1 conv with bias)
    y = jnp.dot(wo_ref[...], out, preferred_element_type=jnp.float32) + bo_ref[...]
    o_ref[0] = y


# ----------------------------------- wrapper -----------------------------------

def linear_attention(x, params, *, heads):
    B, C, H, W = x.shape
    N = H * W
    x_tok = x.reshape(B, C, N)                      # free reshape: (B, C, H*W)

    full = lambda a: pl.BlockSpec(a.shape, lambda b: (0,) * a.ndim)
    weights = [params["wq"], params["wk"], params["wv"], params["wo"], params["bo"]]

    grid_spec = pltpu.PrefetchScalarGridSpec(
        num_scalar_prefetch=0,
        grid=(B,),
        in_specs=[pl.BlockSpec((1, C, N), lambda b: (b, 0, 0))] + [full(w) for w in weights],
        out_specs=pl.BlockSpec((1, C, N), lambda b: (b, 0, 0)),
    )

    kernel = functools.partial(linear_attention_kernel, heads=heads)
    out = pl.pallas_call(
        kernel,
        out_shape=jax.ShapeDtypeStruct((B, C, N), jnp.float32),
        grid_spec=grid_spec,
        compiler_params=pltpu.CompilerParams(
            dimension_semantics=("parallel",),       # disjoint output blocks per batch
            vmem_limit_bytes=32 * 1024 * 1024,
        ),
    )(x_tok, *weights)
    return out.reshape(B, C, H, W)


# --------------------------- pure-JAX reference (same math) ---------------------------

def reference(x, params, *, heads):
    B, C, H, W = x.shape
    N = H * W
    hp = jax.lax.Precision.HIGHEST
    xt = x.reshape(B, C, N)
    q = jnp.einsum('oc,bcn->bon', params["wq"], xt, precision=hp)
    k = jnp.einsum('oc,bcn->bon', params["wk"], xt, precision=hp)
    v = jnp.einsum('oc,bcn->bon', params["wv"], xt, precision=hp)
    hidden = params["wq"].shape[0]
    dh = hidden // heads
    q = q.reshape(B, heads, dh, N)
    k = k.reshape(B, heads, dh, N)
    v = v.reshape(B, heads, dh, N)
    k = jax.nn.softmax(k, axis=-1)
    context = jnp.einsum('bhdn,bhen->bhde', k, v, precision=hp)
    out = jnp.einsum('bhde,bhdn->bhen', context, q, precision=hp)
    out = out.reshape(B, hidden, N)
    y = jnp.einsum('oc,bcn->bon', params["wo"], out, precision=hp) + params["bo"][None]
    return y.reshape(B, C, H, W)


# ----------------------------------- main -----------------------------------

if __name__ == "__main__":
    # LinearAttention(dim=32, heads=4, dim_head=32) on a (2, 32, 16, 16) feature map.
    B, dim, H, W = 2, 32, 16, 16
    heads, dim_head = 4, 32
    hidden = heads * dim_head      # 128
    N = H * W                      # 256 (lane-dense)

    key = jax.random.PRNGKey(0)
    ks = jax.random.split(key, 8)

    def w(k, shape, s=0.05):
        return (s * jax.random.normal(k, shape)).astype(jnp.float32)

    # Conv2d 1x1 weights stored as (out_channels, in_channels); qkv weight pre-split.
    params = {
        "wq": w(ks[0], (hidden, dim)),
        "wk": w(ks[1], (hidden, dim)),
        "wv": w(ks[2], (hidden, dim)),
        "wo": w(ks[3], (dim, hidden)),
        "bo": w(ks[4], (dim, 1)),
    }
    x = jax.random.normal(ks[5], (B, dim, H, W), dtype=jnp.float32)

    out = linear_attention(x, params, heads=heads)
    out = jax.block_until_ready(out)

    ref = reference(x, params, heads=heads)
    np.testing.assert_allclose(np.asarray(out), np.asarray(ref), rtol=1e-4, atol=1e-4)

    print("KERNEL_OK")
</pallas_src>

<mosaic_0001>
module attributes {stable_mosaic.version = 11 : i64} {
  func.func @linear_attention_kernel(%arg0: i32, %arg1: memref<1x32x256xf32, #tpu.memory_space<vmem>>, %arg2: memref<128x32xf32, #tpu.memory_space<vmem>>, %arg3: memref<128x32xf32, #tpu.memory_space<vmem>>, %arg4: memref<128x32xf32, #tpu.memory_space<vmem>>, %arg5: memref<32x128xf32, #tpu.memory_space<vmem>>, %arg6: memref<32x1xf32, #tpu.memory_space<vmem>>, %arg7: memref<1x32x256xf32, #tpu.memory_space<vmem>>) attributes {dimension_semantics = [#tpu.dimension_semantics<parallel>], iteration_bounds = array<i64: 2>, scalar_prefetch = 0 : i64, scratch_operands = 0 : i64, tpu.core_type = #tpu.core_type<tc>, window_params = [{transform_indices = @transform_0, window_bounds = array<i64: 1, 32, 256>}, {pipeline_mode = #tpu.pipeline_mode<synchronous>, transform_indices = @transform_1, window_bounds = array<i64: 128, 32>}, {pipeline_mode = #tpu.pipeline_mode<synchronous>, transform_indices = @transform_2, window_bounds = array<i64: 128, 32>}, {pipeline_mode = #tpu.pipeline_mode<synchronous>, transform_indices = @transform_3, window_bounds = array<i64: 128, 32>}, {pipeline_mode = #tpu.pipeline_mode<synchronous>, transform_indices = @transform_4, window_bounds = array<i64: 32, 128>}, {pipeline_mode = #tpu.pipeline_mode<synchronous>, transform_indices = @transform_5, window_bounds = array<i64: 32, 1>}, {transform_indices = @transform_6, window_bounds = array<i64: 1, 32, 256>}]} {
    %c0 = arith.constant 0 : index
    %c0_0 = arith.constant 0 : index
    %c0_1 = arith.constant 0 : index
    %0 = vector.load %arg1[%c0, %c0_0, %c0_1] : memref<1x32x256xf32, #tpu.memory_space<vmem>>, vector<1x32x256xf32>
    %1 = vector.shape_cast %0 : vector<1x32x256xf32> to vector<32x256xf32>
    %c0_2 = arith.constant 0 : index
    %c0_3 = arith.constant 0 : index
    %2 = vector.load %arg2[%c0_2, %c0_3] : memref<128x32xf32, #tpu.memory_space<vmem>>, vector<128x32xf32>
    %cst = arith.constant dense<0.000000e+00> : vector<128x256xf32>
    %3 = tpu.matmul %2, %1, %cst {dimension_numbers = #tpu.dot_dimension_numbers<[1], [0], [0], [1], [0, 0, 1, 1], [], []>} : vector<128x32xf32>, vector<32x256xf32>, vector<128x256xf32> -> vector<128x256xf32>
    %c0_4 = arith.constant 0 : index
    %c0_5 = arith.constant 0 : index
    %4 = vector.load %arg3[%c0_4, %c0_5] : memref<128x32xf32, #tpu.memory_space<vmem>>, vector<128x32xf32>
    %cst_6 = arith.constant dense<0.000000e+00> : vector<128x256xf32>
    %5 = tpu.matmul %4, %1, %cst_6 {dimension_numbers = #tpu.dot_dimension_numbers<[1], [0], [0], [1], [0, 0, 1, 1], [], []>} : vector<128x32xf32>, vector<32x256xf32>, vector<128x256xf32> -> vector<128x256xf32>
    %c0_7 = arith.constant 0 : index
    %c0_8 = arith.constant 0 : index
    %6 = vector.load %arg4[%c0_7, %c0_8] : memref<128x32xf32, #tpu.memory_space<vmem>>, vector<128x32xf32>
    %cst_9 = arith.constant dense<0.000000e+00> : vector<128x256xf32>
    %7 = tpu.matmul %6, %1, %cst_9 {dimension_numbers = #tpu.dot_dimension_numbers<[1], [0], [0], [1], [0, 0, 1, 1], [], []>} : vector<128x32xf32>, vector<32x256xf32>, vector<128x256xf32> -> vector<128x256xf32>
    %8 = vector.shape_cast %3 : vector<128x256xf32> to vector<4x32x256xf32>
    %9 = vector.shape_cast %5 : vector<128x256xf32> to vector<4x32x256xf32>
    %10 = vector.shape_cast %7 : vector<128x256xf32> to vector<4x32x256xf32>
    %cst_10 = arith.constant dense<0xFF800000> : vector<4x32xf32>
    %11 = vector.multi_reduction <maximumf>, %9, %cst_10 [2] : vector<4x32x256xf32> to vector<4x32xf32>
    %12 = vector.shape_cast %11 : vector<4x32xf32> to vector<4x32x1xf32>
    %13 = vector.broadcast %12 : vector<4x32x1xf32> to vector<4x32x256xf32>
    %14 = arith.subf %9, %13 : vector<4x32x256xf32>
    %15 = math.exp %14 : vector<4x32x256xf32>
    %cst_11 = arith.constant dense<0.000000e+00> : vector<4x32xf32>
    %16 = vector.multi_reduction <add>, %15, %cst_11 [2] : vector<4x32x256xf32> to vector<4x32xf32>
    %17 = vector.shape_cast %16 : vector<4x32xf32> to vector<4x32x1xf32>
    %18 = vector.broadcast %17 : vector<4x32x1xf32> to vector<4x32x256xf32>
    %19 = arith.divf %15, %18 : vector<4x32x256xf32>
    "tpu.trace_start"() <{level = 10 : i32, message = "hen,hdn->hed"}> : () -> ()
    %cst_12 = arith.constant dense<0.000000e+00> : vector<4x32x32xf32>
    %20 = tpu.matmul %10, %19, %cst_12 {dimension_numbers = #tpu.dot_dimension_numbers<[2], [2], [1], [1], [0, 0, 0, 1, 1, 1], [0], [0]>} : vector<4x32x256xf32>, vector<4x32x256xf32>, vector<4x32x32xf32> -> vector<4x32x32xf32>
    "tpu.trace_stop"() : () -> ()
    "tpu.trace_start"() <{level = 10 : i32, message = "hed,hdn->hen"}> : () -> ()
    %cst_13 = arith.constant dense<0.000000e+00> : vector<4x32x256xf32>
    %21 = tpu.matmul %20, %8, %cst_13 {dimension_numbers = #tpu.dot_dimension_numbers<[2], [1], [1], [2], [0, 0, 0, 1, 1, 2], [0], [0]>} : vector<4x32x32xf32>, vector<4x32x256xf32>, vector<4x32x256xf32> -> vector<4x32x256xf32>
    "tpu.trace_stop"() : () -> ()
    %22 = vector.shape_cast %21 : vector<4x32x256xf32> to vector<128x256xf32>
    %c0_14 = arith.constant 0 : index
    %c0_15 = arith.constant 0 : index
    %23 = vector.load %arg5[%c0_14, %c0_15] : memref<32x128xf32, #tpu.memory_space<vmem>>, vector<32x128xf32>
    %cst_16 = arith.constant dense<0.000000e+00> : vector<32x256xf32>
    %24 = tpu.matmul %23, %22, %cst_16 {dimension_numbers = #tpu.dot_dimension_numbers<[1], [0], [0], [1], [0, 0, 1, 1], [], []>} : vector<32x128xf32>, vector<128x256xf32>, vector<32x256xf32> -> vector<32x256xf32>
    %c0_17 = arith.constant 0 : index
    %c0_18 = arith.constant 0 : index
    %25 = vector.load %arg6[%c0_17, %c0_18] : memref<32x1xf32, #tpu.memory_space<vmem>>, vector<32x1xf32>
    %26 = vector.broadcast %25 : vector<32x1xf32> to vector<32x256xf32>
    %27 = arith.addf %24, %26 : vector<32x256xf32>
    %c0_19 = arith.constant 0 : index
    %c0_20 = arith.constant 0 : index
    %c0_21 = arith.constant 0 : index
    %28 = vector.load %arg7[%c0_19, %c0_20, %c0_21] : memref<1x32x256xf32, #tpu.memory_space<vmem>>, vector<1x32x256xf32>
    %29 = vector.shape_cast %28 : vector<1x32x256xf32> to vector<32x256xf32>
    %30 = vector.shape_cast %27 : vector<32x256xf32> to vector<1x32x256xf32>
    tpu.vector_store %arg7[%c0_19, %c0_20, %c0_21], %30 {strides = array<i32>} : memref<1x32x256xf32, #tpu.memory_space<vmem>>, vector<1x32x256xf32>,
    return
  }
  func.func @transform_0(%arg0: i32) -> (i32, i32, i32) {
    %c0_i32 = arith.constant 0 : i32
    %c0_i32_0 = arith.constant 0 : i32
    %c0_i32_1 = arith.constant 0 : i32
    return %arg0, %c0_i32, %c0_i32_0 : i32, i32, i32
  }
  func.func @transform_1(%arg0: i32) -> (i32, i32) {
    %c0_i32 = arith.constant 0 : i32
    %c0_i32_0 = arith.constant 0 : i32
    %c0_i32_1 = arith.constant 0 : i32
    return %c0_i32, %c0_i32_0 : i32, i32
  }
  func.func @transform_2(%arg0: i32) -> (i32, i32) {
    %c0_i32 = arith.constant 0 : i32
    %c0_i32_0 = arith.constant 0 : i32
    %c0_i32_1 = arith.constant 0 : i32
    return %c0_i32, %c0_i32_0 : i32, i32
  }
  func.func @transform_3(%arg0: i32) -> (i32, i32) {
    %c0_i32 = arith.constant 0 : i32
    %c0_i32_0 = arith.constant 0 : i32
    %c0_i32_1 = arith.constant 0 : i32
    return %c0_i32, %c0_i32_0 : i32, i32
  }
  func.func @transform_4(%arg0: i32) -> (i32, i32) {
    %c0_i32 = arith.constant 0 : i32
    %c0_i32_0 = arith.constant 0 : i32
    %c0_i32_1 = arith.constant 0 : i32
    return %c0_i32, %c0_i32_0 : i32, i32
  }
  func.func @transform_5(%arg0: i32) -> (i32, i32) {
    %c0_i32 = arith.constant 0 : i32
    %c0_i32_0 = arith.constant 0 : i32
    %c0_i32_1 = arith.constant 0 : i32
    return %c0_i32, %c0_i32_0 : i32, i32
  }
  func.func @transform_6(%arg0: i32) -> (i32, i32, i32) {
    %c0_i32 = arith.constant 0 : i32
    %c0_i32_0 = arith.constant 0 : i32
    %c0_i32_1 = arith.constant 0 : i32
    return %arg0, %c0_i32, %c0_i32_0 : i32, i32, i32
  }
}

</mosaic_0001>

<llo_original>
// kernel: tpu_custom_call.1
$region0: #{tpu_custom_call.1}
  #allocation0 [shape = 'u32[]', space=smem, size = 0x4, offset = 0x4, fixed_abs, tag = 'smem constant byte address 0x4 - core index']
  #allocation1 [shape = 'u32[144,128]{1,0:T(1,128)}', space=vmem, size = 0x12000, scoped, tag = 'internal scratch']
  %s0 = inlined_call_operand.vmem [shape: f32[2,32,256], index: 0, kind: input, shape index: {}]
  %s1 = inlined_call_operand.vmem [shape: f32[128,32], index: 1, kind: input, shape index: {}]
  %s2 = inlined_call_operand.vmem [shape: f32[128,32], index: 2, kind: input, shape index: {}]
  %s3 = inlined_call_operand.vmem [shape: f32[128,32], index: 3, kind: input, shape index: {}]
  %s4 = inlined_call_operand.vmem [shape: f32[32,128], index: 4, kind: input, shape index: {}]
  %s5 = inlined_call_operand.vmem [shape: f32[32,1], index: 5, kind: input, shape index: {}]
  %s6 = inlined_call_operand.hbm [shape: f32[2,32,256], index: 6, kind: output, shape index: {}]
  %s7 = sld [smem:[#allocation0]]
  $region57: #{tpu_custom_call.1} parent=0
    _
  %s9 = ssub.s32 1, %s7
  %s10 = scalar_select 0, %s9, %s7
  $region1: #{tpu_custom_call.1} parent=0
    #allocation2 [shape = 'u8[65536]{0}', space=vmem, size = 0x10000, scoped, tag = 'output window, operand 0']
    #allocation3 [shape = 's32[2]{0}', space=sflag, size = 0x8, scoped, tag = 'scoped memory for tpu_custom_call.1']
    %11 = vsyncpa [#allocation3], 0
    %s12 = scalar_lea.sflag [#allocation3], 1
    %13 = vsyncpa %s12, 0
    loop: start=0, step=1, limit=4
    $region2: #{tpu_custom_call.1} parent=1 // loop_pre_header
      _
    $region3: #{tpu_custom_call.1} parent=1 // loop_header
      %s15 = sphi 0, %s19
      %p16 = scmp.ge.s32.totalorder %s15, 4
      %s25 = sphi 0, %s27
      %s28 = sphi 0, %s25
      %s29 = sphi 0, %s28
      %s45 = sphi 0, %s29
      %s49 = sphi 0, %s49
      %s51 = sphi 0, %s49
      %s52 = sphi 0, %s51
      %s66 = sphi 0, %s52
      %s70 = sphi 0, %s70
      %s72 = sphi 0, %s70
      %s73 = sphi 0, %s72
      %s87 = sphi 0, %s73
      %s91 = sphi 0, %s91
      %s93 = sphi 0, %s91
      %s94 = sphi 0, %s93
      %s108 = sphi 0, %s94
      %s112 = sphi 0, %s112
      %s114 = sphi 0, %s112
      %s115 = sphi 0, %s114
      %s129 = sphi 0, %s115
      %s133 = sphi 0, %s133
      %s135 = sphi 0, %s133
      %s136 = sphi 0, %s135
      %s150 = sphi 0, %s136
      %s156 = sphi 0, %s158
      %s159 = sphi 0, %s156
      %s160 = sphi 0, %s159
      %s176 = sphi 0, %s160
    $region4: #{tpu_custom_call.1} parent=1 // loop_header_branch
      %18 = sbr.rel (%p16) target = $region8
    $region5: #{tpu_custom_call.1} parent=1 // loop_body
      %s20 = ssub.s32 %s15, 1
      %s21 = ssub.s32 %s15, 2
      %s22 = sadd.s32 %s15, 1
      %s23 = ssub.s32 %s15, %s22
      %p24 = scmp.eq.s32.totalorder %s23, 0
      %s26 = sadd.s32 %s25, 1
      %s27 = scalar_select %p24, %s25, %s26
      %p30 = pneg %p24
      %p31 = scmp.eq.s32.totalorder %s15, 1
      %p32 = por %p30, %p31
      %p33 = scmp.ne.s32.totalorder %s25, %s28
      %p34 = scmp.eq.s32.totalorder %s15, 0
      %p35 = por %p33, %p34
      %p36 = scmp.ne.s32.totalorder %s25, %s28
      %p37 = scmp.eq.s32.totalorder %s20, 1
      %p38 = por %p36, %p37
      %p39 = scmp.ne.s32.totalorder %s28, %s29
      %p40 = scmp.eq.s32.totalorder %s20, 0
      %p41 = por %p39, %p40
      %p42 = scmp.ne.s32.totalorder %s28, %s29
      %p43 = scmp.eq.s32.totalorder %s21, 1
      %p44 = por %p42, %p43
      %p46 = scmp.ne.s32.totalorder %s29, %s45
      %p47 = scmp.eq.s32.totalorder %s21, 0
      %p48 = por %p46, %p47
      %s50 = sadd.s32 %s49, 1
      %p53 = scmp.eq.s32.totalorder %s15, 1
      %p54 = scmp.ne.s32.totalorder %s49, %s51
      %p55 = scmp.eq.s32.totalorder %s15, 0
      %p56 = por %p54, %p55
      %p57 = scmp.ne.s32.totalorder %s49, %s51
      %p58 = scmp.eq.s32.totalorder %s20, 1
      %p59 = por %p57, %p58
      %p60 = scmp.ne.s32.totalorder %s51, %s52
      %p61 = scmp.eq.s32.totalorder %s20, 0
      %p62 = por %p60, %p61
      %p63 = scmp.ne.s32.totalorder %s51, %s52
      %p64 = scmp.eq.s32.totalorder %s21, 1
      %p65 = por %p63, %p64
      %p67 = scmp.ne.s32.totalorder %s52, %s66
      %p68 = scmp.eq.s32.totalorder %s21, 0
      %p69 = por %p67, %p68
      %s71 = sadd.s32 %s70, 1
      %p74 = scmp.eq.s32.totalorder %s15, 1
      %p75 = scmp.ne.s32.totalorder %s70, %s72
      %p76 = scmp.eq.s32.totalorder %s15, 0
      %p77 = por %p75, %p76
      %p78 = scmp.ne.s32.totalorder %s70, %s72
      %p79 = scmp.eq.s32.totalorder %s20, 1
      %p80 = por %p78, %p79
      %p81 = scmp.ne.s32.totalorder %s72, %s73
      %p82 = scmp.eq.s32.totalorder %s20, 0
      %p83 = por %p81, %p82
      %p84 = scmp.ne.s32.totalorder %s72, %s73
      %p85 = scmp.eq.s32.totalorder %s21, 1
      %p86 = por %p84, %p85
      %p88 = scmp.ne.s32.totalorder %s73, %s87
      %p89 = scmp.eq.s32.totalorder %s21, 0
      %p90 = por %p88, %p89
      %s92 = sadd.s32 %s91, 1
      %p95 = scmp.eq.s32.totalorder %s15, 1
      %p96 = scmp.ne.s32.totalorder %s91, %s93
      %p97 = scmp.eq.s32.totalorder %s15, 0
      %p98 = por %p96, %p97
      %p99 = scmp.ne.s32.totalorder %s91, %s93
      %p100 = scmp.eq.s32.totalorder %s20, 1
      %p101 = por %p99, %p100
      %p102 = scmp.ne.s32.totalorder %s93, %s94
      %p103 = scmp.eq.s32.totalorder %s20, 0
      %p104 = por %p102, %p103
      %p105 = scmp.ne.s32.totalorder %s93, %s94
      %p106 = scmp.eq.s32.totalorder %s21, 1
      %p107 = por %p105, %p106
      %p109 = scmp.ne.s32.totalorder %s94, %s108
      %p110 = scmp.eq.s32.totalorder %s21, 0
      %p111 = por %p109, %p110
      %s113 = sadd.s32 %s112, 1
      %p116 = scmp.eq.s32.totalorder %s15, 1
      %p117 = scmp.ne.s32.totalorder %s112, %s114
      %p118 = scmp.eq.s32.totalorder %s15, 0
      %p119 = por %p117, %p118
      %p120 = scmp.ne.s32.totalorder %s112, %s114
      %p121 = scmp.eq.s32.totalorder %s20, 1
      %p122 = por %p120, %p121
      %p123 = scmp.ne.s32.totalorder %s114, %s115
      %p124 = scmp.eq.s32.totalorder %s20, 0
      %p125 = por %p123, %p124
      %p126 = scmp.ne.s32.totalorder %s114, %s115
      %p127 = scmp.eq.s32.totalorder %s21, 1
      %p128 = por %p126, %p127
      %p130 = scmp.ne.s32.totalorder %s115, %s129
      %p131 = scmp.eq.s32.totalorder %s21, 0
      %p132 = por %p130, %p131
      %s134 = sadd.s32 %s133, 1
      %p137 = scmp.eq.s32.totalorder %s15, 1
      %p138 = scmp.ne.s32.totalorder %s133, %s135
      %p139 = scmp.eq.s32.totalorder %s15, 0
      %p140 = por %p138, %p139
      %p141 = scmp.ne.s32.totalorder %s133, %s135
      %p142 = scmp.eq.s32.totalorder %s20, 1
      %p143 = por %p141, %p142
      %p144 = scmp.ne.s32.totalorder %s135, %s136
      %p145 = scmp.eq.s32.totalorder %s20, 0
      %p146 = por %p144, %p145
      %p147 = scmp.ne.s32.totalorder %s135, %s136
      %p148 = scmp.eq.s32.totalorder %s21, 1
      %p149 = por %p147, %p148
      %p151 = scmp.ne.s32.totalorder %s136, %s150
      %p152 = scmp.eq.s32.totalorder %s21, 0
      %p153 = por %p151, %p152
      %s154 = ssub.s32 %s15, %s22
      %p155 = scmp.eq.s32.totalorder %s154, 0
      %s157 = sadd.s32 %s156, 1
      %s158 = scalar_select %p155, %s156, %s157
      %p161 = pneg %p155
      %p162 = scmp.eq.s32.totalorder %s15, 1
      %p163 = por %p161, %p162
      %p164 = scmp.ne.s32.totalorder %s156, %s159
      %p165 = scmp.eq.s32.totalorder %s15, 0
      %p166 = por %p164, %p165
      %p167 = scmp.ne.s32.totalorder %s156, %s159
      %p168 = scmp.eq.s32.totalorder %s20, 1
      %p169 = por %p167, %p168
      %p170 = scmp.ne.s32.totalorder %s159, %s160
      %p171 = scmp.eq.s32.totalorder %s20, 0
      %p172 = por %p170, %p171
      %p173 = scmp.ne.s32.totalorder %s159, %s160
      %p174 = scmp.eq.s32.totalorder %s21, 1
      %p175 = por %p173, %p174
      %p177 = scmp.ne.s32.totalorder %s160, %s176
      %p178 = scmp.eq.s32.totalorder %s21, 0
      %p179 = por %p177, %p178
      %p180 = scmp.le.s32.totalorder 1, %s15
      %p181 = scmp.lt.s32.totalorder %s15, 3
      %p182 = pnand %p180, %p181
      %p183 = pneg %p182
      // Predicated region
      $region9: #{tpu_custom_call.1} parent=5 // pred_check
        _
      $region10: #{tpu_custom_call.1} parent=5 // pred_check_branch
        %185 = sbr.rel (%p182) target = $region12
      $region11: #{tpu_custom_call.1} parent=5 // pred_region
        %s186 = ssub.s32 %s15, 1
        // Predicated region
        $region13: #{tpu_custom_call.1} parent=11 // pred_check
          %p187 = pneg %p62
        $region14: #{tpu_custom_call.1} parent=11 // pred_check_branch
          %189 = sbr.rel (%p187) target = $region16
        $region15: #{tpu_custom_call.1} parent=11 // pred_region
          _
        $region16: #{tpu_custom_call.1} parent=11 // pred_fallthru
          _
        // Predicated region
        $region17: #{tpu_custom_call.1} parent=11 // pred_check
          %p190 = pneg %p83
        $region18: #{tpu_custom_call.1} parent=11 // pred_check_branch
          %192 = sbr.rel (%p190) target = $region20
        $region19: #{tpu_custom_call.1} parent=11 // pred_region
          _
        $region20: #{tpu_custom_call.1} parent=11 // pred_fallthru
          _
        // Predicated region
        $region21: #{tpu_custom_call.1} parent=11 // pred_check
          %p193 = pneg %p104
        $region22: #{tpu_custom_call.1} parent=11 // pred_check_branch
          %195 = sbr.rel (%p193) target = $region24
        $region23: #{tpu_custom_call.1} parent=11 // pred_region
          _
        $region24: #{tpu_custom_call.1} parent=11 // pred_fallthru
          _
        // Predicated region
        $region25: #{tpu_custom_call.1} parent=11 // pred_check
          %p196 = pneg %p125
        $region26: #{tpu_custom_call.1} parent=11 // pred_check_branch
          %198 = sbr.rel (%p196) target = $region28
        $region27: #{tpu_custom_call.1} parent=11 // pred_region
          _
        $region28: #{tpu_custom_call.1} parent=11 // pred_fallthru
          _
        // Predicated region
        $region29: #{tpu_custom_call.1} parent=11 // pred_check
          %p199 = pneg %p146
        $region30: #{tpu_custom_call.1} parent=11 // pred_check_branch
          %201 = sbr.rel (%p199) target = $region32
        $region31: #{tpu_custom_call.1} parent=11 // pred_region
          _
        $region32: #{tpu_custom_call.1} parent=11 // pred_fallthru
          _
      $region12: #{tpu_custom_call.1} parent=5 // pred_fallthru
        _
      %p202 = scmp.lt.s32.totalorder %s15, 2
      // Predicated region
      $region33: #{tpu_custom_call.1} parent=5 // pred_check
        %p203 = pneg %p202
      $region34: #{tpu_custom_call.1} parent=5 // pred_check_branch
        %205 = sbr.rel (%p203) target = $region36
      $region35: #{tpu_custom_call.1} parent=5 // pred_region
        // Predicated region
        $region37: #{tpu_custom_call.1} parent=35 // pred_check
          %p206 = pneg %p35
        $region38: #{tpu_custom_call.1} parent=35 // pred_check_branch
          %208 = sbr.rel (%p206) target = $region40
        $region39: #{tpu_custom_call.1} parent=35 // pred_region
          %p209 = scmp.lt.s32.totalorder %s15, 1
          %s210 = scalar_select %p209, %s15, 1
          %s211 = smul.addr %s210, 8
          %s212 = smul.addr %s211, 8
          %s213 = scalar_lea.vmem %s0, %s212
        $region40: #{tpu_custom_call.1} parent=35 // pred_fallthru
          _
      $region36: #{tpu_custom_call.1} parent=5 // pred_fallthru
        _
      %p214 = scmp.le.s32.totalorder 1, %s15
      %p215 = scmp.lt.s32.totalorder %s15, 3
      %p216 = pnand %p214, %p215
      %p217 = pneg %p216
      // Predicated region
      $region41: #{tpu_custom_call.1} parent=5 // pred_check
        _
      $region42: #{tpu_custom_call.1} parent=5 // pred_check_branch
        %219 = sbr.rel (%p216) target = $region44
      $region43: #{tpu_custom_call.1} parent=5 // pred_region
        %s220 = ssub.s32 %s15, 1
        %p221 = scmp.lt.s32.totalorder %s20, 1
        %s222 = scalar_select %p221, %s20, 1
        %s223 = smul.addr %s222, 8
        %s224 = smul.addr %s223, 8
        %s225 = scalar_lea.vmem %s0, %s224
        %p226 = pneg %p41
        %p227 = pneg %p38
        %p228 = pneg %p62
        %p229 = pneg %p59
        %p230 = pneg %p83
        %p231 = pneg %p80
        %p232 = pneg %p104
        %p233 = pneg %p101
        %p234 = pneg %p125
        %p235 = pneg %p122
        %p236 = pneg %p146
        %p237 = pneg %p143
        %p238 = pneg %p172
        %p239 = pneg %p169
        %s240 = sand.u32 %s159, 1
        %s241 = scalar_lea.sflag [#allocation3], %s240
        %s242 = sand.u32 %s159, 1
        %s243 = smul.addr %s242, 64
        %s244 = scalar_lea.vmem [#allocation2], %s243
        %p245 = scmp.lt.s32.totalorder %s20, 1
        %s246 = scalar_select %p245, %s20, 1
        %s247 = smul.addr %s246, 8
        %s248 = smul.addr %s247, 8
        %s249 = scalar_lea.vmem %s0, %s248
        %v250 = vld [vmem:[%s249] sm:$0xff]
        %v251 = vld [vmem:[%s249 + $0x8] sm:$0xff]
        %v252 = vld [vmem:[%s249 + $0x10] sm:$0xff]
        %v253 = vld [vmem:[%s249 + $0x18] sm:$0xff]
        %v254 = vld [vmem:[%s249 + $0x20] sm:$0xff]
        %v255 = vld [vmem:[%s249 + $0x28] sm:$0xff]
        %v256 = vld [vmem:[%s249 + $0x30] sm:$0xff]
        %v257 = vld [vmem:[%s249 + $0x38] sm:$0xff]
        %v258 = vld [vmem:[%s1] sm:$0xff]
        %v259 = vld [vmem:[%s1 + $0x8] sm:$0xff]
        %v260 = vld [vmem:[%s1 + $0x10] sm:$0xff]
        %v261 = vld [vmem:[%s1 + $0x18] sm:$0xff]
        %v262 = vld [vmem:[%s1 + $0x20] sm:$0xff]
        %v263 = vld [vmem:[%s1 + $0x28] sm:$0xff]
        %v264 = vld [vmem:[%s1 + $0x30] sm:$0xff]
        %v265 = vld [vmem:[%s1 + $0x38] sm:$0xff]
        %v266 = vld [vmem:[%s1 + $0x40] sm:$0xff]
        %v267 = vld [vmem:[%s1 + $0x48] sm:$0xff]
        %v268 = vld [vmem:[%s1 + $0x50] sm:$0xff]
        %v269 = vld [vmem:[%s1 + $0x58] sm:$0xff]
        %v270 = vld [vmem:[%s1 + $0x60] sm:$0xff]
        %v271 = vld [vmem:[%s1 + $0x68] sm:$0xff]
        %v272 = vld [vmem:[%s1 + $0x70] sm:$0xff]
        %v273 = vld [vmem:[%s1 + $0x78] sm:$0xff]
        %vm274 = vcmask 261120
        %v276 = vsel %vm274, %v258, 0
        %v279 = vsel %vm274, %v259, 0
        %v282 = vsel %vm274, %v260, 0
        %v285 = vsel %vm274, %v261, 0
        %v288 = vsel %vm274, %v262, 0
        %v291 = vsel %vm274, %v263, 0
        %v294 = vsel %vm274, %v264, 0
        %v297 = vsel %vm274, %v265, 0
        %v300 = vsel %vm274, %v266, 0
        %v303 = vsel %vm274, %v267, 0
        %v306 = vsel %vm274, %v268, 0
        %v309 = vsel %vm274, %v269, 0
        %v312 = vsel %vm274, %v270, 0
        %v315 = vsel %vm274, %v271, 0
        %v318 = vsel %vm274, %v272, 0
        %v321 = vsel %vm274, %v273, 0
        %323 = vmatprep.subr.mxu0 %v251
        %324 = vmatpush1.msra.mxu0 %v250
        %325 = vmatprep.subr.mxu0 %v253
        %326 = vmatpush1.msra.mxu0 %v252
        %327 = vmatprep.subr.mxu0 %v255
        %328 = vmatpush1.msra.mxu0 %v254
        %329 = vmatprep.subr.mxu0 %v257
        %330 = vmatpush1.msra.mxu0 %v256
        %331 = vmatprep.subr.mxu0 0.0
        %332 = vmatpush1.msra.mxu0 0.0
        %333 = vmatprep.subr.mxu0 0.0
        %334 = vmatpush1.msra.mxu0 0.0
        %335 = vmatprep.subr.mxu0 0.0
        %336 = vmatpush1.msra.mxu0 0.0
        %337 = vmatprep.subr.mxu0 0.0
        %338 = vmatpush1.msra.mxu0 0.0
        %339 = vmatprep.subr.mxu0 0.0
        %340 = vmatpush1.msra.mxu0 0.0
        %341 = vmatprep.subr.mxu0 0.0
        %342 = vmatpush1.msra.mxu0 0.0
        %343 = vmatprep.subr.mxu0 0.0
        %344 = vmatpush1.msra.mxu0 0.0
        %345 = vmatprep.subr.mxu0 0.0
        %346 = vmatpush1.msra.mxu0 0.0
        %347 = vmatprep.subr.mxu0 0.0
        %348 = vmatpush1.msra.mxu0 0.0
        %349 = vmatprep.subr.mxu0 0.0
        %350 = vmatpush1.msra.mxu0 0.0
        %351 = vmatprep.subr.mxu0 0.0
        %352 = vmatpush1.msra.mxu0 0.0
        %353 = vmatprep.subr.mxu0 0.0
        %354 = vmatpush1.msra.mxu0 0.0
        %355 = vmatprep.subr.mxu0 0.0
        %356 = vmatpush1.msra.mxu0 0.0
        %357 = vmatprep.subr.mxu0 0.0
        %358 = vmatpush1.msra.mxu0 0.0
        %359 = vmatprep.subr.mxu0 0.0
        %360 = vmatpush1.msra.mxu0 0.0
        %361 = vmatprep.subr.mxu0 0.0
        %362 = vmatpush1.msra.mxu0 0.0
        %363 = vmatprep.subr.mxu0 0.0
        %364 = vmatpush1.msra.mxu0 0.0
        %365 = vmatprep.subr.mxu0 0.0
        %366 = vmatpush1.msra.mxu0 0.0
        %367 = vmatprep.subr.mxu0 0.0
        %368 = vmatpush1.msra.mxu0 0.0
        %369 = vmatprep.subr.mxu0 0.0
        %370 = vmatpush1.msra.mxu0 0.0
        %371 = vmatprep.subr.mxu0 0.0
        %372 = vmatpush1.msra.mxu0 0.0
        %373 = vmatprep.subr.mxu0 0.0
        %374 = vmatpush1.msra.mxu0 0.0
        %375 = vmatprep.subr.mxu0 0.0
        %376 = vmatpush1.msra.mxu0 0.0
        %377 = vmatprep.subr.mxu0 0.0
        %378 = vmatpush1.msra.mxu0 0.0
        %379 = vmatprep.subr.mxu0 0.0
        %380 = vmatpush1.msra.mxu0 0.0
        %381 = vmatprep.subr.mxu0 0.0
        %382 = vmatpush1.msra.mxu0 0.0
        %383 = vmatprep.subr.mxu0 0.0
        %384 = vmatpush1.msra.mxu0 0.0
        %385 = vmatprep.subr.mxu0 0.0
        %386 = vmatpush1.msra.mxu0 0.0
        %387 = vmatprep.mubr.f32.mxu0 0.0
        %388 = vmatmul.mubr.f32.gmra.mrb[0].mxu0 %v276
        %v389 = vpop.f32.mrb[0].mxu0
        %v390 = vadd.f32 0.0, %v389
        %v391 = vpop.f32.mrb[0].mxu0
        %v392 = vadd.f32 0.0, %v391
        %393 = vmatprep.mubr.f32.mxu0 0.0
        %394 = vmatmul.mubr.f32.gmra.mrb[0].mxu0 %v279
        %v395 = vpop.f32.mrb[0].mxu0
        %v396 = vadd.f32 0.0, %v395
        %v397 = vpop.f32.mrb[0].mxu0
        %v398 = vadd.f32 0.0, %v397
        %399 = vmatprep.mubr.f32.mxu0 0.0
        %400 = vmatmul.mubr.f32.gmra.mrb[0].mxu0 %v282
        %v401 = vpop.f32.mrb[0].mxu0
        %v402 = vadd.f32 0.0, %v401
        %v403 = vpop.f32.mrb[0].mxu0
        %v404 = vadd.f32 0.0, %v403
        %405 = vmatprep.mubr.f32.mxu0 0.0
        %406 = vmatmul.mubr.f32.gmra.mrb[0].mxu0 %v285
        %v407 = vpop.f32.mrb[0].mxu0
        %v408 = vadd.f32 0.0, %v407
        %v409 = vpop.f32.mrb[0].mxu0
        %v410 = vadd.f32 0.0, %v409
        %411 = vmatprep.mubr.f32.mxu0 0.0
        %412 = vmatmul.mubr.f32.gmra.mrb[0].mxu0 %v288
        %v413 = vpop.f32.mrb[0].mxu0
        %v414 = vadd.f32 0.0, %v413
        %v415 = vpop.f32.mrb[0].mxu0
        %v416 = vadd.f32 0.0, %v415
        %417 = vmatprep.mubr.f32.mxu0 0.0
        %418 = vmatmul.mubr.f32.gmra.mrb[0].mxu0 %v291
        %v419 = vpop.f32.mrb[0].mxu0
        %v420 = vadd.f32 0.0, %v419
        %v421 = vpop.f32.mrb[0].mxu0
        %v422 = vadd.f32 0.0, %v421
        %423 = vmatprep.mubr.f32.mxu0 0.0
        %424 = vmatmul.mubr.f32.gmra.mrb[0].mxu0 %v294
        %v425 = vpop.f32.mrb[0].mxu0
        %v426 = vadd.f32 0.0, %v425
        %v427 = vpop.f32.mrb[0].mxu0
        %v428 = vadd.f32 0.0, %v427
        %429 = vmatprep.mubr.f32.mxu0 0.0
        %430 = vmatmul.mubr.f32.gmra.mrb[0].mxu0 %v297
        %v431 = vpop.f32.mrb[0].mxu0
        %v432 = vadd.f32 0.0, %v431
        %v433 = vpop.f32.mrb[0].mxu0
        %v434 = vadd.f32 0.0, %v433
        %435 = vmatprep.mubr.f32.mxu0 0.0
        %436 = vmatmul.mubr.f32.gmra.mrb[0].mxu0 %v300
        %v437 = vpop.f32.mrb[0].mxu0
        %v438 = vadd.f32 0.0, %v437
        %v439 = vpop.f32.mrb[0].mxu0
        %v440 = vadd.f32 0.0, %v439
        %441 = vmatprep.mubr.f32.mxu0 0.0
        %442 = vmatmul.mubr.f32.gmra.mrb[0].mxu0 %v303
        %v443 = vpop.f32.mrb[0].mxu0
        %v444 = vadd.f32 0.0, %v443
        %v445 = vpop.f32.mrb[0].mxu0
        %v446 = vadd.f32 0.0, %v445
        %447 = vmatprep.mubr.f32.mxu0 0.0
        %448 = vmatmul.mubr.f32.gmra.mrb[0].mxu0 %v306
        %v449 = vpop.f32.mrb[0].mxu0
        %v450 = vadd.f32 0.0, %v449
        %v451 = vpop.f32.mrb[0].mxu0
        %v452 = vadd.f32 0.0, %v451
        %453 = vmatprep.mubr.f32.mxu0 0.0
        %454 = vmatmul.mubr.f32.gmra.mrb[0].mxu0 %v309
        %v455 = vpop.f32.mrb[0].mxu0
        %v456 = vadd.f32 0.0, %v455
        %v457 = vpop.f32.mrb[0].mxu0
        %v458 = vadd.f32 0.0, %v457
        %459 = vmatprep.mubr.f32.mxu0 0.0
        %460 = vmatmul.mubr.f32.gmra.mrb[0].mxu0 %v312
        %v461 = vpop.f32.mrb[0].mxu0
        %v462 = vadd.f32 0.0, %v461
        %v463 = vpop.f32.mrb[0].mxu0
        %v464 = vadd.f32 0.0, %v463
        %465 = vmatprep.mubr.f32.mxu0 0.0
        %466 = vmatmul.mubr.f32.gmra.mrb[0].mxu0 %v315
        %v467 = vpop.f32.mrb[0].mxu0
        %v468 = vadd.f32 0.0, %v467
        %v469 = vpop.f32.mrb[0].mxu0
        %v470 = vadd.f32 0.0, %v469
        %471 = vmatprep.mubr.f32.mxu0 0.0
        %472 = vmatmul.mubr.f32.gmra.mrb[0].mxu0 %v318
        %v473 = vpop.f32.mrb[0].mxu0
        %v474 = vadd.f32 0.0, %v473
        %v475 = vpop.f32.mrb[0].mxu0
        %v476 = vadd.f32 0.0, %v475
        %477 = vmatprep.mubr.f32.mxu0 0.0
        %478 = vmatmul.mubr.f32.gmra.mrb[0].mxu0 %v321
        %v479 = vpop.f32.mrb[0].mxu0
        %v480 = vadd.f32 0.0, %v479
        %v481 = vpop.f32.mrb[0].mxu0
        %v482 = vadd.f32 0.0, %v481
        %483 = vdwg.mxu0
        %v484 = vld [vmem:[%s2] sm:$0xff]
        %v485 = vld [vmem:[%s2 + $0x8] sm:$0xff]
        %v486 = vld [vmem:[%s2 + $0x10] sm:$0xff]
        %v487 = vld [vmem:[%s2 + $0x18] sm:$0xff]
        %v488 = vld [vmem:[%s2 + $0x20] sm:$0xff]
        %v489 = vld [vmem:[%s2 + $0x28] sm:$0xff]
        %v490 = vld [vmem:[%s2 + $0x30] sm:$0xff]
        %v491 = vld [vmem:[%s2 + $0x38] sm:$0xff]
        %v492 = vld [vmem:[%s2 + $0x40] sm:$0xff]
        %v493 = vld [vmem:[%s2 + $0x48] sm:$0xff]
        %v494 = vld [vmem:[%s2 + $0x50] sm:$0xff]
        %v495 = vld [vmem:[%s2 + $0x58] sm:$0xff]
        %v496 = vld [vmem:[%s2 + $0x60] sm:$0xff]
        %v497 = vld [vmem:[%s2 + $0x68] sm:$0xff]
        %v498 = vld [vmem:[%s2 + $0x70] sm:$0xff]
        %v499 = vld [vmem:[%s2 + $0x78] sm:$0xff]
        %v501 = vsel %vm274, %v484, 0
        %v504 = vsel %vm274, %v485, 0
        %v507 = vsel %vm274, %v486, 0
        %v510 = vsel %vm274, %v487, 0
        %v513 = vsel %vm274, %v488, 0
        %v516 = vsel %vm274, %v489, 0
        %v519 = vsel %vm274, %v490, 0
        %v522 = vsel %vm274, %v491, 0
        %v525 = vsel %vm274, %v492, 0
        %v528 = vsel %vm274, %v493, 0
        %v531 = vsel %vm274, %v494, 0
        %v534 = vsel %vm274, %v495, 0
        %v537 = vsel %vm274, %v496, 0
        %v540 = vsel %vm274, %v497, 0
        %v543 = vsel %vm274, %v498, 0
        %v546 = vsel %vm274, %v499, 0
        %548 = vmatprep.subr.mxu0 %v251
        %549 = vmatpush1.msra.mxu0 %v250
        %550 = vmatprep.subr.mxu0 %v253
        %551 = vmatpush1.msra.mxu0 %v252
        %552 = vmatprep.subr.mxu0 %v255
        %553 = vmatpush1.msra.mxu0 %v254
        %554 = vmatprep.subr.mxu0 %v257
        %555 = vmatpush1.msra.mxu0 %v256
        %556 = vmatprep.subr.mxu0 0.0
        %557 = vmatpush1.msra.mxu0 0.0
        %558 = vmatprep.subr.mxu0 0.0
        %559 = vmatpush1.msra.mxu0 0.0
        %560 = vmatprep.subr.mxu0 0.0
        %561 = vmatpush1.msra.mxu0 0.0
        %562 = vmatprep.subr.mxu0 0.0
        %563 = vmatpush1.msra.mxu0 0.0
        %564 = vmatprep.subr.mxu0 0.0
        %565 = vmatpush1.msra.mxu0 0.0
        %566 = vmatprep.subr.mxu0 0.0
        %567 = vmatpush1.msra.mxu0 0.0
        %568 = vmatprep.subr.mxu0 0.0
        %569 = vmatpush1.msra.mxu0 0.0
        %570 = vmatprep.subr.mxu0 0.0
        %571 = vmatpush1.msra.mxu0 0.0
        %572 = vmatprep.subr.mxu0 0.0
        %573 = vmatpush1.msra.mxu0 0.0
        %574 = vmatprep.subr.mxu0 0.0
        %575 = vmatpush1.msra.mxu0 0.0
        %576 = vmatprep.subr.mxu0 0.0
        %577 = vmatpush1.msra.mxu0 0.0
        %578 = vmatprep.subr.mxu0 0.0
        %579 = vmatpush1.msra.mxu0 0.0
        %580 = vmatprep.subr.mxu0 0.0
        %581 = vmatpush1.msra.mxu0 0.0
        %582 = vmatprep.subr.mxu0 0.0
        %583 = vmatpush1.msra.mxu0 0.0
        %584 = vmatprep.subr.mxu0 0.0
        %585 = vmatpush1.msra.mxu0 0.0
        %586 = vmatprep.subr.mxu0 0.0
        %587 = vmatpush1.msra.mxu0 0.0
        %588 = vmatprep.subr.mxu0 0.0
        %589 = vmatpush1.msra.mxu0 0.0
        %590 = vmatprep.subr.mxu0 0.0
        %591 = vmatpush1.msra.mxu0 0.0
        %592 = vmatprep.subr.mxu0 0.0
        %593 = vmatpush1.msra.mxu0 0.0
        %594 = vmatprep.subr.mxu0 0.0
        %595 = vmatpush1.msra.mxu0 0.0
        %596 = vmatprep.subr.mxu0 0.0
        %597 = vmatpush1.msra.mxu0 0.0
        %598 = vmatprep.subr.mxu0 0.0
        %599 = vmatpush1.msra.mxu0 0.0
        %600 = vmatprep.subr.mxu0 0.0
        %601 = vmatpush1.msra.mxu0 0.0
        %602 = vmatprep.subr.mxu0 0.0
        %603 = vmatpush1.msra.mxu0 0.0
        %604 = vmatprep.subr.mxu0 0.0
        %605 = vmatpush1.msra.mxu0 0.0
        %606 = vmatprep.subr.mxu0 0.0
        %607 = vmatpush1.msra.mxu0 0.0
        %608 = vmatprep.subr.mxu0 0.0
        %609 = vmatpush1.msra.mxu0 0.0
        %610 = vmatprep.subr.mxu0 0.0
        %611 = vmatpush1.msra.mxu0 0.0
        %612 = vmatprep.mubr.f32.mxu0 0.0
        %613 = vmatmul.mubr.f32.gmra.mrb[0].mxu0 %v501
        %v614 = vpop.f32.mrb[0].mxu0
        %v615 = vadd.f32 0.0, %v614
        %v616 = vpop.f32.mrb[0].mxu0
        %v617 = vadd.f32 0.0, %v616
        %618 = vmatprep.mubr.f32.mxu0 0.0
        %619 = vmatmul.mubr.f32.gmra.mrb[0].mxu0 %v504
        %v620 = vpop.f32.mrb[0].mxu0
        %v621 = vadd.f32 0.0, %v620
        %v622 = vpop.f32.mrb[0].mxu0
        %v623 = vadd.f32 0.0, %v622
        %624 = vmatprep.mubr.f32.mxu0 0.0
        %625 = vmatmul.mubr.f32.gmra.mrb[0].mxu0 %v507
        %v626 = vpop.f32.mrb[0].mxu0
        %v627 = vadd.f32 0.0, %v626
        %v628 = vpop.f32.mrb[0].mxu0
        %v629 = vadd.f32 0.0, %v628
        %630 = vmatprep.mubr.f32.mxu0 0.0
        %631 = vmatmul.mubr.f32.gmra.mrb[0].mxu0 %v510
        %v632 = vpop.f32.mrb[0].mxu0
        %v633 = vadd.f32 0.0, %v632
        %v634 = vpop.f32.mrb[0].mxu0
        %v635 = vadd.f32 0.0, %v634
        %636 = vmatprep.mubr.f32.mxu0 0.0
        %637 = vmatmul.mubr.f32.gmra.mrb[0].mxu0 %v513
        %v638 = vpop.f32.mrb[0].mxu0
        %v639 = vadd.f32 0.0, %v638
        %v640 = vpop.f32.mrb[0].mxu0
        %v641 = vadd.f32 0.0, %v640
        %642 = vmatprep.mubr.f32.mxu0 0.0
        %643 = vmatmul.mubr.f32.gmra.mrb[0].mxu0 %v516
        %v644 = vpop.f32.mrb[0].mxu0
        %v645 = vadd.f32 0.0, %v644
        %v646 = vpop.f32.mrb[0].mxu0
        %v647 = vadd.f32 0.0, %v646
        %648 = vmatprep.mubr.f32.mxu0 0.0
        %649 = vmatmul.mubr.f32.gmra.mrb[0].mxu0 %v519
        %v650 = vpop.f32.mrb[0].mxu0
        %v651 = vadd.f32 0.0, %v650
        %v652 = vpop.f32.mrb[0].mxu0
        %v653 = vadd.f32 0.0, %v652
        %654 = vmatprep.mubr.f32.mxu0 0.0
        %655 = vmatmul.mubr.f32.gmra.mrb[0].mxu0 %v522
        %v656 = vpop.f32.mrb[0].mxu0
        %v657 = vadd.f32 0.0, %v656
        %v658 = vpop.f32.mrb[0].mxu0
        %v659 = vadd.f32 0.0, %v658
        %660 = vmatprep.mubr.f32.mxu0 0.0
        %661 = vmatmul.mubr.f32.gmra.mrb[0].mxu0 %v525
        %v662 = vpop.f32.mrb[0].mxu0
        %v663 = vadd.f32 0.0, %v662
        %v664 = vpop.f32.mrb[0].mxu0
        %v665 = vadd.f32 0.0, %v664
        %666 = vmatprep.mubr.f32.mxu0 0.0
        %667 = vmatmul.mubr.f32.gmra.mrb[0].mxu0 %v528
        %v668 = vpop.f32.mrb[0].mxu0
        %v669 = vadd.f32 0.0, %v668
        %v670 = vpop.f32.mrb[0].mxu0
        %v671 = vadd.f32 0.0, %v670
        %672 = vmatprep.mubr.f32.mxu0 0.0
        %673 = vmatmul.mubr.f32.gmra.mrb[0].mxu0 %v531
        %v674 = vpop.f32.mrb[0].mxu0
        %v675 = vadd.f32 0.0, %v674
        %v676 = vpop.f32.mrb[0].mxu0
        %v677 = vadd.f32 0.0, %v676
        %678 = vmatprep.mubr.f32.mxu0 0.0
        %679 = vmatmul.mubr.f32.gmra.mrb[0].mxu0 %v534
        %v680 = vpop.f32.mrb[0].mxu0
        %v681 = vadd.f32 0.0, %v680
        %v682 = vpop.f32.mrb[0].mxu0
        %v683 = vadd.f32 0.0, %v682
        %684 = vmatprep.mubr.f32.mxu0 0.0
        %685 = vmatmul.mubr.f32.gmra.mrb[0].mxu0 %v537
        %v686 = vpop.f32.mrb[0].mxu0
        %v687 = vadd.f32 0.0, %v686
        %v688 = vpop.f32.mrb[0].mxu0
        %v689 = vadd.f32 0.0, %v688
        %690 = vmatprep.mubr.f32.mxu0 0.0
        %691 = vmatmul.mubr.f32.gmra.mrb[0].mxu0 %v540
        %v692 = vpop.f32.mrb[0].mxu0
        %v693 = vadd.f32 0.0, %v692
        %v694 = vpop.f32.mrb[0].mxu0
        %v695 = vadd.f32 0.0, %v694
        %696 = vmatprep.mubr.f32.mxu0 0.0
        %697 = vmatmul.mubr.f32.gmra.mrb[0].mxu0 %v543
        %v698 = vpop.f32.mrb[0].mxu0
        %v699 = vadd.f32 0.0, %v698
        %v700 = vpop.f32.mrb[0].mxu0
        %v701 = vadd.f32 0.0, %v700
        %702 = vmatprep.mubr.f32.mxu0 0.0
        %703 = vmatmul.mubr.f32.gmra.mrb[0].mxu0 %v546
        %v704 = vpop.f32.mrb[0].mxu0
        %v705 = vadd.f32 0.0, %v704
        %v706 = vpop.f32.mrb[0].mxu0
        %v707 = vadd.f32 0.0, %v706
        %708 = vdwg.mxu0
        %v709 = vld [vmem:[%s3] sm:$0xff]
        %v710 = vld [vmem:[%s3 + $0x8] sm:$0xff]
        %v711 = vld [vmem:[%s3 + $0x10] sm:$0xff]
        %v712 = vld [vmem:[%s3 + $0x18] sm:$0xff]
        %v713 = vld [vmem:[%s3 + $0x20] sm:$0xff]
        %v714 = vld [vmem:[%s3 + $0x28] sm:$0xff]
        %v715 = vld [vmem:[%s3 + $0x30] sm:$0xff]
        %v716 = vld [vmem:[%s3 + $0x38] sm:$0xff]
        %v717 = vld [vmem:[%s3 + $0x40] sm:$0xff]
        %v718 = vld [vmem:[%s3 + $0x48] sm:$0xff]
        %v719 = vld [vmem:[%s3 + $0x50] sm:$0xff]
        %v720 = vld [vmem:[%s3 + $0x58] sm:$0xff]
        %v721 = vld [vmem:[%s3 + $0x60] sm:$0xff]
        %v722 = vld [vmem:[%s3 + $0x68] sm:$0xff]
        %v723 = vld [vmem:[%s3 + $0x70] sm:$0xff]
        %v724 = vld [vmem:[%s3 + $0x78] sm:$0xff]
        %v726 = vsel %vm274, %v709, 0
        %v729 = vsel %vm274, %v710, 0
        %v732 = vsel %vm274, %v711, 0
        %v735 = vsel %vm274, %v712, 0
        %v738 = vsel %vm274, %v713, 0
        %v741 = vsel %vm274, %v714, 0
        %v744 = vsel %vm274, %v715, 0
        %v747 = vsel %vm274, %v716, 0
        %v750 = vsel %vm274, %v717, 0
        %v753 = vsel %vm274, %v718, 0
        %v756 = vsel %vm274, %v719, 0
        %v759 = vsel %vm274, %v720, 0
        %v762 = vsel %vm274, %v721, 0
        %v765 = vsel %vm274, %v722, 0
        %v768 = vsel %vm274, %v723, 0
        %v771 = vsel %vm274, %v724, 0
        %773 = vmatprep.subr.mxu0 %v251
        %774 = vmatpush1.msra.mxu0 %v250
        %775 = vmatprep.subr.mxu0 %v253
        %776 = vmatpush1.msra.mxu0 %v252
        %777 = vmatprep.subr.mxu0 %v255
        %778 = vmatpush1.msra.mxu0 %v254
        %779 = vmatprep.subr.mxu0 %v257
        %780 = vmatpush1.msra.mxu0 %v256
        %781 = vmatprep.subr.mxu0 0.0
        %782 = vmatpush1.msra.mxu0 0.0
        %783 = vmatprep.subr.mxu0 0.0
        %784 = vmatpush1.msra.mxu0 0.0
        %785 = vmatprep.subr.mxu0 0.0
        %786 = vmatpush1.msra.mxu0 0.0
        %787 = vmatprep.subr.mxu0 0.0
        %788 = vmatpush1.msra.mxu0 0.0
        %789 = vmatprep.subr.mxu0 0.0
        %790 = vmatpush1.msra.mxu0 0.0
        %791 = vmatprep.subr.mxu0 0.0
        %792 = vmatpush1.msra.mxu0 0.0
        %793 = vmatprep.subr.mxu0 0.0
        %794 = vmatpush1.msra.mxu0 0.0
        %795 = vmatprep.subr.mxu0 0.0
        %796 = vmatpush1.msra.mxu0 0.0
        %797 = vmatprep.subr.mxu0 0.0
        %798 = vmatpush1.msra.mxu0 0.0
        %799 = vmatprep.subr.mxu0 0.0
        %800 = vmatpush1.msra.mxu0 0.0
        %801 = vmatprep.subr.mxu0 0.0
        %802 = vmatpush1.msra.mxu0 0.0
        %803 = vmatprep.subr.mxu0 0.0
        %804 = vmatpush1.msra.mxu0 0.0
        %805 = vmatprep.subr.mxu0 0.0
        %806 = vmatpush1.msra.mxu0 0.0
        %807 = vmatprep.subr.mxu0 0.0
        %808 = vmatpush1.msra.mxu0 0.0
        %809 = vmatprep.subr.mxu0 0.0
        %810 = vmatpush1.msra.mxu0 0.0
        %811 = vmatprep.subr.mxu0 0.0
        %812 = vmatpush1.msra.mxu0 0.0
        %813 = vmatprep.subr.mxu0 0.0
        %814 = vmatpush1.msra.mxu0 0.0
        %815 = vmatprep.subr.mxu0 0.0
        %816 = vmatpush1.msra.mxu0 0.0
        %817 = vmatprep.subr.mxu0 0.0
        %818 = vmatpush1.msra.mxu0 0.0
        %819 = vmatprep.subr.mxu0 0.0
        %820 = vmatpush1.msra.mxu0 0.0
        %821 = vmatprep.subr.mxu0 0.0
        %822 = vmatpush1.msra.mxu0 0.0
        %823 = vmatprep.subr.mxu0 0.0
        %824 = vmatpush1.msra.mxu0 0.0
        %825 = vmatprep.subr.mxu0 0.0
        %826 = vmatpush1.msra.mxu0 0.0
        %827 = vmatprep.subr.mxu0 0.0
        %828 = vmatpush1.msra.mxu0 0.0
        %829 = vmatprep.subr.mxu0 0.0
        %830 = vmatpush1.msra.mxu0 0.0
        %831 = vmatprep.subr.mxu0 0.0
        %832 = vmatpush1.msra.mxu0 0.0
        %833 = vmatprep.subr.mxu0 0.0
        %834 = vmatpush1.msra.mxu0 0.0
        %835 = vmatprep.subr.mxu0 0.0
        %836 = vmatpush1.msra.mxu0 0.0
        %837 = vmatprep.mubr.f32.mxu0 0.0
        %838 = vmatmul.mubr.f32.gmra.mrb[0].mxu0 %v726
        %v839 = vpop.f32.mrb[0].mxu0
        %v840 = vadd.f32 0.0, %v839
        %v841 = vpop.f32.mrb[0].mxu0
        %v842 = vadd.f32 0.0, %v841
        %843 = vmatprep.mubr.f32.mxu0 0.0
        %844 = vmatmul.mubr.f32.gmra.mrb[0].mxu0 %v729
        %v845 = vpop.f32.mrb[0].mxu0
        %v846 = vadd.f32 0.0, %v845
        %v847 = vpop.f32.mrb[0].mxu0
        %v848 = vadd.f32 0.0, %v847
        %849 = vmatprep.mubr.f32.mxu0 0.0
        %850 = vmatmul.mubr.f32.gmra.mrb[0].mxu0 %v732
        %v851 = vpop.f32.mrb[0].mxu0
        %v852 = vadd.f32 0.0, %v851
        %v853 = vpop.f32.mrb[0].mxu0
        %v854 = vadd.f32 0.0, %v853
        %855 = vmatprep.mubr.f32.mxu0 0.0
        %856 = vmatmul.mubr.f32.gmra.mrb[0].mxu0 %v735
        %v857 = vpop.f32.mrb[0].mxu0
        %v858 = vadd.f32 0.0, %v857
        %v859 = vpop.f32.mrb[0].mxu0
        %v860 = vadd.f32 0.0, %v859
        %861 = vmatprep.mubr.f32.mxu0 0.0
        %862 = vmatmul.mubr.f32.gmra.mrb[0].mxu0 %v738
        %v863 = vpop.f32.mrb[0].mxu0
        %v864 = vadd.f32 0.0, %v863
        %v865 = vpop.f32.mrb[0].mxu0
        %v866 = vadd.f32 0.0, %v865
        %867 = vmatprep.mubr.f32.mxu0 0.0
        %868 = vmatmul.mubr.f32.gmra.mrb[0].mxu0 %v741
        %v869 = vpop.f32.mrb[0].mxu0
        %v870 = vadd.f32 0.0, %v869
        %v871 = vpop.f32.mrb[0].mxu0
        %v872 = vadd.f32 0.0, %v871
        %873 = vmatprep.mubr.f32.mxu0 0.0
        %874 = vmatmul.mubr.f32.gmra.mrb[0].mxu0 %v744
        %v875 = vpop.f32.mrb[0].mxu0
        %v876 = vadd.f32 0.0, %v875
        %v877 = vpop.f32.mrb[0].mxu0
        %v878 = vadd.f32 0.0, %v877
        %879 = vmatprep.mubr.f32.mxu0 0.0
        %880 = vmatmul.mubr.f32.gmra.mrb[0].mxu0 %v747
        %v881 = vpop.f32.mrb[0].mxu0
        %v882 = vadd.f32 0.0, %v881
        %v883 = vpop.f32.mrb[0].mxu0
        %v884 = vadd.f32 0.0, %v883
        %885 = vmatprep.mubr.f32.mxu0 0.0
        %886 = vmatmul.mubr.f32.gmra.mrb[0].mxu0 %v750
        %v887 = vpop.f32.mrb[0].mxu0
        %v888 = vadd.f32 0.0, %v887
        %v889 = vpop.f32.mrb[0].mxu0
        %v890 = vadd.f32 0.0, %v889
        %891 = vmatprep.mubr.f32.mxu0 0.0
        %892 = vmatmul.mubr.f32.gmra.mrb[0].mxu0 %v753
        %v893 = vpop.f32.mrb[0].mxu0
        %v894 = vadd.f32 0.0, %v893
        %v895 = vpop.f32.mrb[0].mxu0
        %v896 = vadd.f32 0.0, %v895
        %897 = vmatprep.mubr.f32.mxu0 0.0
        %898 = vmatmul.mubr.f32.gmra.mrb[0].mxu0 %v756
        %v899 = vpop.f32.mrb[0].mxu0
        %v900 = vadd.f32 0.0, %v899
        %v901 = vpop.f32.mrb[0].mxu0
        %v902 = vadd.f32 0.0, %v901
        %903 = vmatprep.mubr.f32.mxu0 0.0
        %904 = vmatmul.mubr.f32.gmra.mrb[0].mxu0 %v759
        %v905 = vpop.f32.mrb[0].mxu0
        %v906 = vadd.f32 0.0, %v905
        %v907 = vpop.f32.mrb[0].mxu0
        %v908 = vadd.f32 0.0, %v907
        %909 = vmatprep.mubr.f32.mxu0 0.0
        %910 = vmatmul.mubr.f32.gmra.mrb[0].mxu0 %v762
        %v911 = vpop.f32.mrb[0].mxu0
        %v912 = vadd.f32 0.0, %v911
        %v913 = vpop.f32.mrb[0].mxu0
        %v914 = vadd.f32 0.0, %v913
        %915 = vmatprep.mubr.f32.mxu0 0.0
        %916 = vmatmul.mubr.f32.gmra.mrb[0].mxu0 %v765
        %v917 = vpop.f32.mrb[0].mxu0
        %v918 = vadd.f32 0.0, %v917
        %v919 = vpop.f32.mrb[0].mxu0
        %v920 = vadd.f32 0.0, %v919
        %921 = vmatprep.mubr.f32.mxu0 0.0
        %922 = vmatmul.mubr.f32.gmra.mrb[0].mxu0 %v768
        %v923 = vpop.f32.mrb[0].mxu0
        %v924 = vadd.f32 0.0, %v923
        %v925 = vpop.f32.mrb[0].mxu0
        %v926 = vadd.f32 0.0, %v925
        %927 = vmatprep.mubr.f32.mxu0 0.0
        %928 = vmatmul.mubr.f32.gmra.mrb[0].mxu0 %v771
        %v929 = vpop.f32.mrb[0].mxu0
        %v930 = vadd.f32 0.0, %v929
        %v931 = vpop.f32.mrb[0].mxu0
        %v932 = vadd.f32 0.0, %v931
        %933 = vdwg.mxu0
        %v934 = vmax.f32 %v615, %v617
        %935 = vmax.xlane.f32.xlu0 %v934
        %v936 = vpop.xlane.xlu0 %935
        %v937 = vmax.f32 %v621, %v623
        %938 = vmax.xlane.f32.xlu0 %v937
        %v939 = vpop.xlane.xlu0 %938
        %v940 = vmax.f32 %v627, %v629
        %941 = vmax.xlane.f32.xlu0 %v940
        %v942 = vpop.xlane.xlu0 %941
        %v943 = vmax.f32 %v633, %v635
        %944 = vmax.xlane.f32.xlu0 %v943
        %v945 = vpop.xlane.xlu0 %944
        %v946 = vmax.f32 %v639, %v641
        %947 = vmax.xlane.f32.xlu0 %v946
        %v948 = vpop.xlane.xlu0 %947
        %v949 = vmax.f32 %v645, %v647
        %950 = vmax.xlane.f32.xlu0 %v949
        %v951 = vpop.xlane.xlu0 %950
        %v952 = vmax.f32 %v651, %v653
        %953 = vmax.xlane.f32.xlu0 %v952
        %v954 = vpop.xlane.xlu0 %953
        %v955 = vmax.f32 %v657, %v659
        %956 = vmax.xlane.f32.xlu0 %v955
        %v957 = vpop.xlane.xlu0 %956
        %v958 = vmax.f32 %v663, %v665
        %959 = vmax.xlane.f32.xlu0 %v958
        %v960 = vpop.xlane.xlu0 %959
        %v961 = vmax.f32 %v669, %v671
        %962 = vmax.xlane.f32.xlu0 %v961
        %v963 = vpop.xlane.xlu0 %962
        %v964 = vmax.f32 %v675, %v677
        %965 = vmax.xlane.f32.xlu0 %v964
        %v966 = vpop.xlane.xlu0 %965
        %v967 = vmax.f32 %v681, %v683
        %968 = vmax.xlane.f32.xlu0 %v967
        %v969 = vpop.xlane.xlu0 %968
        %v970 = vmax.f32 %v687, %v689
        %971 = vmax.xlane.f32.xlu0 %v970
        %v972 = vpop.xlane.xlu0 %971
        %v973 = vmax.f32 %v693, %v695
        %974 = vmax.xlane.f32.xlu0 %v973
        %v975 = vpop.xlane.xlu0 %974
        %v976 = vmax.f32 %v699, %v701
        %977 = vmax.xlane.f32.xlu0 %v976
        %v978 = vpop.xlane.xlu0 %977
        %v979 = vmax.f32 %v705, %v707
        %980 = vmax.xlane.f32.xlu0 %v979
        %v981 = vpop.xlane.xlu0 %980
        %v982 = vsub.f32 %v615, %v936
        %v983 = vsub.f32 %v617, %v936
        %v984 = vsub.f32 %v621, %v939
        %v985 = vsub.f32 %v623, %v939
        %v986 = vsub.f32 %v627, %v942
        %v987 = vsub.f32 %v629, %v942
        %v988 = vsub.f32 %v633, %v945
        %v989 = vsub.f32 %v635, %v945
        %v990 = vsub.f32 %v639, %v948
        %v991 = vsub.f32 %v641, %v948
        %v992 = vsub.f32 %v645, %v951
        %v993 = vsub.f32 %v647, %v951
        %v994 = vsub.f32 %v651, %v954
        %v995 = vsub.f32 %v653, %v954
        %v996 = vsub.f32 %v657, %v957
        %v997 = vsub.f32 %v659, %v957
        %v998 = vsub.f32 %v663, %v960
        %v999 = vsub.f32 %v665, %v960
        %v1000 = vsub.f32 %v669, %v963
        %v1001 = vsub.f32 %v671, %v963
        %v1002 = vsub.f32 %v675, %v966
        %v1003 = vsub.f32 %v677, %v966
        %v1004 = vsub.f32 %v681, %v969
        %v1005 = vsub.f32 %v683, %v969
        %v1006 = vsub.f32 %v687, %v972
        %v1007 = vsub.f32 %v689, %v972
        %v1008 = vsub.f32 %v693, %v975
        %v1009 = vsub.f32 %v695, %v975
        %v1010 = vsub.f32 %v699, %v978
        %v1011 = vsub.f32 %v701, %v978
        %v1012 = vsub.f32 %v705, %v981
        %v1013 = vsub.f32 %v707, %v981
        %v1014 = vmul.f32 %v982, 1.442695
        %v1015 = vpow.pop %v1014
        %v1016 = vmul.f32 %v983, 1.442695
        %v1017 = vpow.pop %v1016
        %v1018 = vmul.f32 %v984, 1.442695
        %v1019 = vpow.pop %v1018
        %v1020 = vmul.f32 %v985, 1.442695
        %v1021 = vpow.pop %v1020
        %v1022 = vmul.f32 %v986, 1.442695
        %v1023 = vpow.pop %v1022
        %v1024 = vmul.f32 %v987, 1.442695
        %v1025 = vpow.pop %v1024
        %v1026 = vmul.f32 %v988, 1.442695
        %v1027 = vpow.pop %v1026
        %v1028 = vmul.f32 %v989, 1.442695
        %v1029 = vpow.pop %v1028
        %v1030 = vmul.f32 %v990, 1.442695
        %v1031 = vpow.pop %v1030
        %v1032 = vmul.f32 %v991, 1.442695
        %v1033 = vpow.pop %v1032
        %v1034 = vmul.f32 %v992, 1.442695
        %v1035 = vpow.pop %v1034
        %v1036 = vmul.f32 %v993, 1.442695
        %v1037 = vpow.pop %v1036
        %v1038 = vmul.f32 %v994, 1.442695
        %v1039 = vpow.pop %v1038
        %v1040 = vmul.f32 %v995, 1.442695
        %v1041 = vpow.pop %v1040
        %v1042 = vmul.f32 %v996, 1.442695
        %v1043 = vpow.pop %v1042
        %v1044 = vmul.f32 %v997, 1.442695
        %v1045 = vpow.pop %v1044
        %v1046 = vmul.f32 %v998, 1.442695
        %v1047 = vpow.pop %v1046
        %v1048 = vmul.f32 %v999, 1.442695
        %v1049 = vpow.pop %v1048
        %v1050 = vmul.f32 %v1000, 1.442695
        %v1051 = vpow.pop %v1050
        %v1052 = vmul.f32 %v1001, 1.442695
        %v1053 = vpow.pop %v1052
        %v1054 = vmul.f32 %v1002, 1.442695
        %v1055 = vpow.pop %v1054
        %v1056 = vmul.f32 %v1003, 1.442695
        %v1057 = vpow.pop %v1056
        %v1058 = vmul.f32 %v1004, 1.442695
        %v1059 = vpow.pop %v1058
        %v1060 = vmul.f32 %v1005, 1.442695
        %v1061 = vpow.pop %v1060
        %v1062 = vmul.f32 %v1006, 1.442695
        %v1063 = vpow.pop %v1062
        %v1064 = vmul.f32 %v1007, 1.442695
        %v1065 = vpow.pop %v1064
        %v1066 = vmul.f32 %v1008, 1.442695
        %v1067 = vpow.pop %v1066
        %v1068 = vmul.f32 %v1009, 1.442695
        %v1069 = vpow.pop %v1068
        %v1070 = vmul.f32 %v1010, 1.442695
        %v1071 = vpow.pop %v1070
        %v1072 = vmul.f32 %v1011, 1.442695
        %v1073 = vpow.pop %v1072
        %v1074 = vmul.f32 %v1012, 1.442695
        %v1075 = vpow.pop %v1074
        %v1076 = vmul.f32 %v1013, 1.442695
        %v1077 = vpow.pop %v1076
        %v1078 = vadd.f32 %v1015, %v1017
        %1079 = vadd.xlane.f32.xlu0 %v1078
        %v1080 = vpop.xlane.xlu0 %1079
        %v1081 = vadd.f32 %v1019, %v1021
        %1082 = vadd.xlane.f32.xlu0 %v1081
        %v1083 = vpop.xlane.xlu0 %1082
        %v1084 = vadd.f32 %v1023, %v1025
        %1085 = vadd.xlane.f32.xlu0 %v1084
        %v1086 = vpop.xlane.xlu0 %1085
        %v1087 = vadd.f32 %v1027, %v1029
        %1088 = vadd.xlane.f32.xlu0 %v1087
        %v1089 = vpop.xlane.xlu0 %1088
        %v1090 = vadd.f32 %v1031, %v1033
        %1091 = vadd.xlane.f32.xlu0 %v1090
        %v1092 = vpop.xlane.xlu0 %1091
        %v1093 = vadd.f32 %v1035, %v1037
        %1094 = vadd.xlane.f32.xlu0 %v1093
        %v1095 = vpop.xlane.xlu0 %1094
        %v1096 = vadd.f32 %v1039, %v1041
        %1097 = vadd.xlane.f32.xlu0 %v1096
        %v1098 = vpop.xlane.xlu0 %1097
        %v1099 = vadd.f32 %v1043, %v1045
        %1100 = vadd.xlane.f32.xlu0 %v1099
        %v1101 = vpop.xlane.xlu0 %1100
        %v1102 = vadd.f32 %v1047, %v1049
        %1103 = vadd.xlane.f32.xlu0 %v1102
        %v1104 = vpop.xlane.xlu0 %1103
        %v1105 = vadd.f32 %v1051, %v1053
        %1106 = vadd.xlane.f32.xlu0 %v1105
        %v1107 = vpop.xlane.xlu0 %1106
        %v1108 = vadd.f32 %v1055, %v1057
        %1109 = vadd.xlane.f32.xlu0 %v1108
        %v1110 = vpop.xlane.xlu0 %1109
        %v1111 = vadd.f32 %v1059, %v1061
        %1112 = vadd.xlane.f32.xlu0 %v1111
        %v1113 = vpop.xlane.xlu0 %1112
        %v1114 = vadd.f32 %v1063, %v1065
        %1115 = vadd.xlane.f32.xlu0 %v1114
        %v1116 = vpop.xlane.xlu0 %1115
        %v1117 = vadd.f32 %v1067, %v1069
        %1118 = vadd.xlane.f32.xlu0 %v1117
        %v1119 = vpop.xlane.xlu0 %1118
        %v1120 = vadd.f32 %v1071, %v1073
        %1121 = vadd.xlane.f32.xlu0 %v1120
        %v1122 = vpop.xlane.xlu0 %1121
        %v1123 = vadd.f32 %v1075, %v1077
        %1124 = vadd.xlane.f32.xlu0 %v1123
        %v1125 = vpop.xlane.xlu0 %1124
        %v1126 = vrcp.pop %v1080
        %v1127 = vmul.f32 %v1015, %v1126
        %v1128 = vmul.f32 %v1017, %v1126
        %v1129 = vrcp.pop %v1083
        %v1130 = vmul.f32 %v1019, %v1129
        %v1131 = vmul.f32 %v1021, %v1129
        %v1132 = vrcp.pop %v1086
        %v1133 = vmul.f32 %v1023, %v1132
        %v1134 = vmul.f32 %v1025, %v1132
        %v1135 = vrcp.pop %v1089
        %v1136 = vmul.f32 %v1027, %v1135
        %v1137 = vmul.f32 %v1029, %v1135
        %v1138 = vrcp.pop %v1092
        %v1139 = vmul.f32 %v1031, %v1138
        %v1140 = vmul.f32 %v1033, %v1138
        %v1141 = vrcp.pop %v1095
        %v1142 = vmul.f32 %v1035, %v1141
        %v1143 = vmul.f32 %v1037, %v1141
        %v1144 = vrcp.pop %v1098
        %v1145 = vmul.f32 %v1039, %v1144
        %v1146 = vmul.f32 %v1041, %v1144
        %v1147 = vrcp.pop %v1101
        %v1148 = vmul.f32 %v1043, %v1147
        %v1149 = vmul.f32 %v1045, %v1147
        %v1150 = vrcp.pop %v1104
        %v1151 = vmul.f32 %v1047, %v1150
        %v1152 = vmul.f32 %v1049, %v1150
        %v1153 = vrcp.pop %v1107
        %v1154 = vmul.f32 %v1051, %v1153
        %v1155 = vmul.f32 %v1053, %v1153
        %v1156 = vrcp.pop %v1110
        %v1157 = vmul.f32 %v1055, %v1156
        %v1158 = vmul.f32 %v1057, %v1156
        %v1159 = vrcp.pop %v1113
        %v1160 = vmul.f32 %v1059, %v1159
        %v1161 = vmul.f32 %v1061, %v1159
        %v1162 = vrcp.pop %v1116
        %v1163 = vmul.f32 %v1063, %v1162
        %v1164 = vmul.f32 %v1065, %v1162
        %v1165 = vrcp.pop %v1119
        %v1166 = vmul.f32 %v1067, %v1165
        %v1167 = vmul.f32 %v1069, %v1165
        %v1168 = vrcp.pop %v1122
        %v1169 = vmul.f32 %v1071, %v1168
        %v1170 = vmul.f32 %v1073, %v1168
        %v1171 = vrcp.pop %v1125
        %v1172 = vmul.f32 %v1075, %v1171
        %v1173 = vmul.f32 %v1077, %v1171
        %1174 = vmatprep.subr.mxu0 %v1128
        %1175 = vmatpush1.xpose.msra.mxu0 %v1127
        %1176 = vmatprep.subr.mxu0 %v1131
        %1177 = vmatpush1.xpose.msra.mxu0 %v1130
        %1178 = vmatprep.subr.mxu0 %v1134
        %1179 = vmatpush1.xpose.msra.mxu0 %v1133
        %1180 = vmatprep.subr.mxu0 %v1137
        %1181 = vmatpush1.xpose.msra.mxu0 %v1136
        %1182 = vmatprep.subr.mxu0 0.0
        %1183 = vmatpush1.xpose.msra.mxu0 0.0
        %1184 = vmatprep.subr.mxu0 0.0
        %1185 = vmatpush1.xpose.msra.mxu0 0.0
        %1186 = vmatprep.subr.mxu0 0.0
        %1187 = vmatpush1.xpose.msra.mxu0 0.0
        %1188 = vmatprep.subr.mxu0 0.0
        %1189 = vmatpush1.xpose.msra.mxu0 0.0
        %1190 = vmatprep.subr.mxu0 0.0
        %1191 = vmatpush1.xpose.msra.mxu0 0.0
        %1192 = vmatprep.subr.mxu0 0.0
        %1193 = vmatpush1.xpose.msra.mxu0 0.0
        %1194 = vmatprep.subr.mxu0 0.0
        %1195 = vmatpush1.xpose.msra.mxu0 0.0
        %1196 = vmatprep.subr.mxu0 0.0
        %1197 = vmatpush1.xpose.msra.mxu0 0.0
        %1198 = vmatprep.subr.mxu0 0.0
        %1199 = vmatpush1.xpose.msra.mxu0 0.0
        %1200 = vmatprep.subr.mxu0 0.0
        %1201 = vmatpush1.xpose.msra.mxu0 0.0
        %1202 = vmatprep.subr.mxu0 0.0
        %1203 = vmatpush1.xpose.msra.mxu0 0.0
        %1204 = vmatprep.subr.mxu0 0.0
        %1205 = vmatpush1.xpose.msra.mxu0 0.0
        %1206 = vmatprep.subr.mxu0 0.0
        %1207 = vmatpush1.xpose.msra.mxu0 0.0
        %1208 = vmatprep.subr.mxu0 0.0
        %1209 = vmatpush1.xpose.msra.mxu0 0.0
        %1210 = vmatprep.subr.mxu0 0.0
        %1211 = vmatpush1.xpose.msra.mxu0 0.0
        %1212 = vmatprep.subr.mxu0 0.0
        %1213 = vmatpush1.xpose.msra.mxu0 0.0
        %1214 = vmatprep.subr.mxu0 0.0
        %1215 = vmatpush1.xpose.msra.mxu0 0.0
        %1216 = vmatprep.subr.mxu0 0.0
        %1217 = vmatpush1.xpose.msra.mxu0 0.0
        %1218 = vmatprep.subr.mxu0 0.0
        %1219 = vmatpush1.xpose.msra.mxu0 0.0
        %1220 = vmatprep.subr.mxu0 0.0
        %1221 = vmatpush1.xpose.msra.mxu0 0.0
        %1222 = vmatprep.subr.mxu0 0.0
        %1223 = vmatpush1.xpose.msra.mxu0 0.0
        %1224 = vmatprep.subr.mxu0 0.0
        %1225 = vmatpush1.xpose.msra.mxu0 0.0
        %1226 = vmatprep.subr.mxu0 0.0
        %1227 = vmatpush1.xpose.msra.mxu0 0.0
        %1228 = vmatprep.subr.mxu0 0.0
        %1229 = vmatpush1.xpose.msra.mxu0 0.0
        %1230 = vmatprep.subr.mxu0 0.0
        %1231 = vmatpush1.xpose.msra.mxu0 0.0
        %1232 = vmatprep.subr.mxu0 0.0
        %1233 = vmatpush1.xpose.msra.mxu0 0.0
        %1234 = vmatprep.subr.mxu0 0.0
        %1235 = vmatpush1.xpose.msra.mxu0 0.0
        %1236 = vmatprep.subr.mxu0 0.0
        %1237 = vmatpush1.xpose.msra.mxu0 0.0
        %1238 = vmatprep.mubr.f32.mxu0 %v842
        %1239 = vmatmul.mubr.f32.gmra.mrb[0].mxu0 %v840
        %v1240 = vpop.f32.mrb[0].mxu0
        %v1241 = vadd.f32 0.0, %v1240
        %v1242 = vpop.f32.mrb[0].mxu0
        %1243 = vmatprep.mubr.f32.mxu0 %v848
        %1244 = vmatmul.mubr.f32.gmra.mrb[0].mxu0 %v846
        %v1245 = vpop.f32.mrb[0].mxu0
        %v1246 = vadd.f32 0.0, %v1245
        %v1247 = vpop.f32.mrb[0].mxu0
        %1248 = vmatprep.mubr.f32.mxu0 %v854
        %1249 = vmatmul.mubr.f32.gmra.mrb[0].mxu0 %v852
        %v1250 = vpop.f32.mrb[0].mxu0
        %v1251 = vadd.f32 0.0, %v1250
        %v1252 = vpop.f32.mrb[0].mxu0
        %1253 = vmatprep.mubr.f32.mxu0 %v860
        %1254 = vmatmul.mubr.f32.gmra.mrb[0].mxu0 %v858
        %v1255 = vpop.f32.mrb[0].mxu0
        %v1256 = vadd.f32 0.0, %v1255
        %v1257 = vpop.f32.mrb[0].mxu0
        %1258 = vdwg.mxu0
        %1259 = vmatprep.subr.mxu0 %v1140
        %1260 = vmatpush1.xpose.msra.mxu0 %v1139
        %1261 = vmatprep.subr.mxu0 %v1143
        %1262 = vmatpush1.xpose.msra.mxu0 %v1142
        %1263 = vmatprep.subr.mxu0 %v1146
        %1264 = vmatpush1.xpose.msra.mxu0 %v1145
        %1265 = vmatprep.subr.mxu0 %v1149
        %1266 = vmatpush1.xpose.msra.mxu0 %v1148
        %1267 = vmatprep.subr.mxu0 0.0
        %1268 = vmatpush1.xpose.msra.mxu0 0.0
        %1269 = vmatprep.subr.mxu0 0.0
        %1270 = vmatpush1.xpose.msra.mxu0 0.0
        %1271 = vmatprep.subr.mxu0 0.0
        %1272 = vmatpush1.xpose.msra.mxu0 0.0
        %1273 = vmatprep.subr.mxu0 0.0
        %1274 = vmatpush1.xpose.msra.mxu0 0.0
        %1275 = vmatprep.subr.mxu0 0.0
        %1276 = vmatpush1.xpose.msra.mxu0 0.0
        %1277 = vmatprep.subr.mxu0 0.0
        %1278 = vmatpush1.xpose.msra.mxu0 0.0
        %1279 = vmatprep.subr.mxu0 0.0
        %1280 = vmatpush1.xpose.msra.mxu0 0.0
        %1281 = vmatprep.subr.mxu0 0.0
        %1282 = vmatpush1.xpose.msra.mxu0 0.0
        %1283 = vmatprep.subr.mxu0 0.0
        %1284 = vmatpush1.xpose.msra.mxu0 0.0
        %1285 = vmatprep.subr.mxu0 0.0
        %1286 = vmatpush1.xpose.msra.mxu0 0.0
        %1287 = vmatprep.subr.mxu0 0.0
        %1288 = vmatpush1.xpose.msra.mxu0 0.0
        %1289 = vmatprep.subr.mxu0 0.0
        %1290 = vmatpush1.xpose.msra.mxu0 0.0
        %1291 = vmatprep.subr.mxu0 0.0
        %1292 = vmatpush1.xpose.msra.mxu0 0.0
        %1293 = vmatprep.subr.mxu0 0.0
        %1294 = vmatpush1.xpose.msra.mxu0 0.0
        %1295 = vmatprep.subr.mxu0 0.0
        %1296 = vmatpush1.xpose.msra.mxu0 0.0
        %1297 = vmatprep.subr.mxu0 0.0
        %1298 = vmatpush1.xpose.msra.mxu0 0.0
        %1299 = vmatprep.subr.mxu0 0.0
        %1300 = vmatpush1.xpose.msra.mxu0 0.0
        %1301 = vmatprep.subr.mxu0 0.0
        %1302 = vmatpush1.xpose.msra.mxu0 0.0
        %1303 = vmatprep.subr.mxu0 0.0
        %1304 = vmatpush1.xpose.msra.mxu0 0.0
        %1305 = vmatprep.subr.mxu0 0.0
        %1306 = vmatpush1.xpose.msra.mxu0 0.0
        %1307 = vmatprep.subr.mxu0 0.0
        %1308 = vmatpush1.xpose.msra.mxu0 0.0
        %1309 = vmatprep.subr.mxu0 0.0
        %1310 = vmatpush1.xpose.msra.mxu0 0.0
        %1311 = vmatprep.subr.mxu0 0.0
        %1312 = vmatpush1.xpose.msra.mxu0 0.0
        %1313 = vmatprep.subr.mxu0 0.0
        %1314 = vmatpush1.xpose.msra.mxu0 0.0
        %1315 = vmatprep.subr.mxu0 0.0
        %1316 = vmatpush1.xpose.msra.mxu0 0.0
        %1317 = vmatprep.subr.mxu0 0.0
        %1318 = vmatpush1.xpose.msra.mxu0 0.0
        %1319 = vmatprep.subr.mxu0 0.0
        %1320 = vmatpush1.xpose.msra.mxu0 0.0
        %1321 = vmatprep.subr.mxu0 0.0
        %1322 = vmatpush1.xpose.msra.mxu0 0.0
        %1323 = vmatprep.mubr.f32.mxu0 %v866
        %1324 = vmatmul.mubr.f32.gmra.mrb[0].mxu0 %v864
        %v1325 = vpop.f32.mrb[0].mxu0
        %v1326 = vadd.f32 0.0, %v1325
        %v1327 = vpop.f32.mrb[0].mxu0
        %1328 = vmatprep.mubr.f32.mxu0 %v872
        %1329 = vmatmul.mubr.f32.gmra.mrb[0].mxu0 %v870
        %v1330 = vpop.f32.mrb[0].mxu0
        %v1331 = vadd.f32 0.0, %v1330
        %v1332 = vpop.f32.mrb[0].mxu0
        %1333 = vmatprep.mubr.f32.mxu0 %v878
        %1334 = vmatmul.mubr.f32.gmra.mrb[0].mxu0 %v876
        %v1335 = vpop.f32.mrb[0].mxu0
        %v1336 = vadd.f32 0.0, %v1335
        %v1337 = vpop.f32.mrb[0].mxu0
        %1338 = vmatprep.mubr.f32.mxu0 %v884
        %1339 = vmatmul.mubr.f32.gmra.mrb[0].mxu0 %v882
        %v1340 = vpop.f32.mrb[0].mxu0
        %v1341 = vadd.f32 0.0, %v1340
        %v1342 = vpop.f32.mrb[0].mxu0
        %1343 = vdwg.mxu0
        %1344 = vmatprep.subr.mxu0 %v1152
        %1345 = vmatpush1.xpose.msra.mxu0 %v1151
        %1346 = vmatprep.subr.mxu0 %v1155
        %1347 = vmatpush1.xpose.msra.mxu0 %v1154
        %1348 = vmatprep.subr.mxu0 %v1158
        %1349 = vmatpush1.xpose.msra.mxu0 %v1157
        %1350 = vmatprep.subr.mxu0 %v1161
        %1351 = vmatpush1.xpose.msra.mxu0 %v1160
        %1352 = vmatprep.subr.mxu0 0.0
        %1353 = vmatpush1.xpose.msra.mxu0 0.0
        %1354 = vmatprep.subr.mxu0 0.0
        %1355 = vmatpush1.xpose.msra.mxu0 0.0
        %1356 = vmatprep.subr.mxu0 0.0
        %1357 = vmatpush1.xpose.msra.mxu0 0.0
        %1358 = vmatprep.subr.mxu0 0.0
        %1359 = vmatpush1.xpose.msra.mxu0 0.0
        %1360 = vmatprep.subr.mxu0 0.0
        %1361 = vmatpush1.xpose.msra.mxu0 0.0
        %1362 = vmatprep.subr.mxu0 0.0
        %1363 = vmatpush1.xpose.msra.mxu0 0.0
        %1364 = vmatprep.subr.mxu0 0.0
        %1365 = vmatpush1.xpose.msra.mxu0 0.0
        %1366 = vmatprep.subr.mxu0 0.0
        %1367 = vmatpush1.xpose.msra.mxu0 0.0
        %1368 = vmatprep.subr.mxu0 0.0
        %1369 = vmatpush1.xpose.msra.mxu0 0.0
        %1370 = vmatprep.subr.mxu0 0.0
        %1371 = vmatpush1.xpose.msra.mxu0 0.0
        %1372 = vmatprep.subr.mxu0 0.0
        %1373 = vmatpush1.xpose.msra.mxu0 0.0
        %1374 = vmatprep.subr.mxu0 0.0
        %1375 = vmatpush1.xpose.msra.mxu0 0.0
        %1376 = vmatprep.subr.mxu0 0.0
        %1377 = vmatpush1.xpose.msra.mxu0 0.0
        %1378 = vmatprep.subr.mxu0 0.0
        %1379 = vmatpush1.xpose.msra.mxu0 0.0
        %1380 = vmatprep.subr.mxu0 0.0
        %1381 = vmatpush1.xpose.msra.mxu0 0.0
        %1382 = vmatprep.subr.mxu0 0.0
        %1383 = vmatpush1.xpose.msra.mxu0 0.0
        %1384 = vmatprep.subr.mxu0 0.0
        %1385 = vmatpush1.xpose.msra.mxu0 0.0
        %1386 = vmatprep.subr.mxu0 0.0
        %1387 = vmatpush1.xpose.msra.mxu0 0.0
        %1388 = vmatprep.subr.mxu0 0.0
        %1389 = vmatpush1.xpose.msra.mxu0 0.0
        %1390 = vmatprep.subr.mxu0 0.0
        %1391 = vmatpush1.xpose.msra.mxu0 0.0
        %1392 = vmatprep.subr.mxu0 0.0
        %1393 = vmatpush1.xpose.msra.mxu0 0.0
        %1394 = vmatprep.subr.mxu0 0.0
        %1395 = vmatpush1.xpose.msra.mxu0 0.0
        %1396 = vmatprep.subr.mxu0 0.0
        %1397 = vmatpush1.xpose.msra.mxu0 0.0
        %1398 = vmatprep.subr.mxu0 0.0
        %1399 = vmatpush1.xpose.msra.mxu0 0.0
        %1400 = vmatprep.subr.mxu0 0.0
        %1401 = vmatpush1.xpose.msra.mxu0 0.0
        %1402 = vmatprep.subr.mxu0 0.0
        %1403 = vmatpush1.xpose.msra.mxu0 0.0
        %1404 = vmatprep.subr.mxu0 0.0
        %1405 = vmatpush1.xpose.msra.mxu0 0.0
        %1406 = vmatprep.subr.mxu0 0.0
        %1407 = vmatpush1.xpose.msra.mxu0 0.0
        %1408 = vmatprep.mubr.f32.mxu0 %v890
        %1409 = vmatmul.mubr.f32.gmra.mrb[0].mxu0 %v888
        %v1410 = vpop.f32.mrb[0].mxu0
        %v1411 = vadd.f32 0.0, %v1410
        %v1412 = vpop.f32.mrb[0].mxu0
        %1413 = vmatprep.mubr.f32.mxu0 %v896
        %1414 = vmatmul.mubr.f32.gmra.mrb[0].mxu0 %v894
        %v1415 = vpop.f32.mrb[0].mxu0
        %v1416 = vadd.f32 0.0, %v1415
        %v1417 = vpop.f32.mrb[0].mxu0
        %1418 = vmatprep.mubr.f32.mxu0 %v902
        %1419 = vmatmul.mubr.f32.gmra.mrb[0].mxu0 %v900
        %v1420 = vpop.f32.mrb[0].mxu0
        %v1421 = vadd.f32 0.0, %v1420
        %v1422 = vpop.f32.mrb[0].mxu0
        %1423 = vmatprep.mubr.f32.mxu0 %v908
        %1424 = vmatmul.mubr.f32.gmra.mrb[0].mxu0 %v906
        %v1425 = vpop.f32.mrb[0].mxu0
        %v1426 = vadd.f32 0.0, %v1425
        %v1427 = vpop.f32.mrb[0].mxu0
        %1428 = vdwg.mxu0
        %1429 = vmatprep.subr.mxu0 %v1164
        %1430 = vmatpush1.xpose.msra.mxu0 %v1163
        %1431 = vmatprep.subr.mxu0 %v1167
        %1432 = vmatpush1.xpose.msra.mxu0 %v1166
        %1433 = vmatprep.subr.mxu0 %v1170
        %1434 = vmatpush1.xpose.msra.mxu0 %v1169
        %1435 = vmatprep.subr.mxu0 %v1173
        %1436 = vmatpush1.xpose.msra.mxu0 %v1172
        %1437 = vmatprep.subr.mxu0 0.0
        %1438 = vmatpush1.xpose.msra.mxu0 0.0
        %1439 = vmatprep.subr.mxu0 0.0
        %1440 = vmatpush1.xpose.msra.mxu0 0.0
        %1441 = vmatprep.subr.mxu0 0.0
        %1442 = vmatpush1.xpose.msra.mxu0 0.0
        %1443 = vmatprep.subr.mxu0 0.0
        %1444 = vmatpush1.xpose.msra.mxu0 0.0
        %1445 = vmatprep.subr.mxu0 0.0
        %1446 = vmatpush1.xpose.msra.mxu0 0.0
        %1447 = vmatprep.subr.mxu0 0.0
        %1448 = vmatpush1.xpose.msra.mxu0 0.0
        %1449 = vmatprep.subr.mxu0 0.0
        %1450 = vmatpush1.xpose.msra.mxu0 0.0
        %1451 = vmatprep.subr.mxu0 0.0
        %1452 = vmatpush1.xpose.msra.mxu0 0.0
        %1453 = vmatprep.subr.mxu0 0.0
        %1454 = vmatpush1.xpose.msra.mxu0 0.0
        %1455 = vmatprep.subr.mxu0 0.0
        %1456 = vmatpush1.xpose.msra.mxu0 0.0
        %1457 = vmatprep.subr.mxu0 0.0
        %1458 = vmatpush1.xpose.msra.mxu0 0.0
        %1459 = vmatprep.subr.mxu0 0.0
        %1460 = vmatpush1.xpose.msra.mxu0 0.0
        %1461 = vmatprep.subr.mxu0 0.0
        %1462 = vmatpush1.xpose.msra.mxu0 0.0
        %1463 = vmatprep.subr.mxu0 0.0
        %1464 = vmatpush1.xpose.msra.mxu0 0.0
        %1465 = vmatprep.subr.mxu0 0.0
        %1466 = vmatpush1.xpose.msra.mxu0 0.0
        %1467 = vmatprep.subr.mxu0 0.0
        %1468 = vmatpush1.xpose.msra.mxu0 0.0
        %1469 = vmatprep.subr.mxu0 0.0
        %1470 = vmatpush1.xpose.msra.mxu0 0.0
        %1471 = vmatprep.subr.mxu0 0.0
        %1472 = vmatpush1.xpose.msra.mxu0 0.0
        %1473 = vmatprep.subr.mxu0 0.0
        %1474 = vmatpush1.xpose.msra.mxu0 0.0
        %1475 = vmatprep.subr.mxu0 0.0
        %1476 = vmatpush1.xpose.msra.mxu0 0.0
        %1477 = vmatprep.subr.mxu0 0.0
        %1478 = vmatpush1.xpose.msra.mxu0 0.0
        %1479 = vmatprep.subr.mxu0 0.0
        %1480 = vmatpush1.xpose.msra.mxu0 0.0
        %1481 = vmatprep.subr.mxu0 0.0
        %1482 = vmatpush1.xpose.msra.mxu0 0.0
        %1483 = vmatprep.subr.mxu0 0.0
        %1484 = vmatpush1.xpose.msra.mxu0 0.0
        %1485 = vmatprep.subr.mxu0 0.0
        %1486 = vmatpush1.xpose.msra.mxu0 0.0
        %1487 = vmatprep.subr.mxu0 0.0
        %1488 = vmatpush1.xpose.msra.mxu0 0.0
        %1489 = vmatprep.subr.mxu0 0.0
        %1490 = vmatpush1.xpose.msra.mxu0 0.0
        %1491 = vmatprep.subr.mxu0 0.0
        %1492 = vmatpush1.xpose.msra.mxu0 0.0
        %1493 = vmatprep.mubr.f32.mxu0 %v914
        %1494 = vmatmul.mubr.f32.gmra.mrb[0].mxu0 %v912
        %v1495 = vpop.f32.mrb[0].mxu0
        %v1496 = vadd.f32 0.0, %v1495
        %v1497 = vpop.f32.mrb[0].mxu0
        %1498 = vmatprep.mubr.f32.mxu0 %v920
        %1499 = vmatmul.mubr.f32.gmra.mrb[0].mxu0 %v918
        %v1500 = vpop.f32.mrb[0].mxu0
        %v1501 = vadd.f32 0.0, %v1500
        %v1502 = vpop.f32.mrb[0].mxu0
        %1503 = vmatprep.mubr.f32.mxu0 %v926
        %1504 = vmatmul.mubr.f32.gmra.mrb[0].mxu0 %v924
        %v1505 = vpop.f32.mrb[0].mxu0
        %v1506 = vadd.f32 0.0, %v1505
        %v1507 = vpop.f32.mrb[0].mxu0
        %1508 = vmatprep.mubr.f32.mxu0 %v932
        %1509 = vmatmul.mubr.f32.gmra.mrb[0].mxu0 %v930
        %v1510 = vpop.f32.mrb[0].mxu0
        %v1511 = vadd.f32 0.0, %v1510
        %v1512 = vpop.f32.mrb[0].mxu0
        %1513 = vdwg.mxu0
        %v1515 = vsel %vm274, %v1241, 0
        %v1518 = vsel %vm274, %v1246, 0
        %v1521 = vsel %vm274, %v1251, 0
        %v1524 = vsel %vm274, %v1256, 0
        %1526 = vmatprep.subr.mxu0 %v392
        %1527 = vmatpush1.msra.mxu0 %v390
        %1528 = vmatprep.subr.mxu0 %v398
        %1529 = vmatpush1.msra.mxu0 %v396
        %1530 = vmatprep.subr.mxu0 %v404
        %1531 = vmatpush1.msra.mxu0 %v402
        %1532 = vmatprep.subr.mxu0 %v410
        %1533 = vmatpush1.msra.mxu0 %v408
        %1534 = vmatprep.subr.mxu0 0.0
        %1535 = vmatpush1.msra.mxu0 0.0
        %1536 = vmatprep.subr.mxu0 0.0
        %1537 = vmatpush1.msra.mxu0 0.0
        %1538 = vmatprep.subr.mxu0 0.0
        %1539 = vmatpush1.msra.mxu0 0.0
        %1540 = vmatprep.subr.mxu0 0.0
        %1541 = vmatpush1.msra.mxu0 0.0
        %1542 = vmatprep.subr.mxu0 0.0
        %1543 = vmatpush1.msra.mxu0 0.0
        %1544 = vmatprep.subr.mxu0 0.0
        %1545 = vmatpush1.msra.mxu0 0.0
        %1546 = vmatprep.subr.mxu0 0.0
        %1547 = vmatpush1.msra.mxu0 0.0
        %1548 = vmatprep.subr.mxu0 0.0
        %1549 = vmatpush1.msra.mxu0 0.0
        %1550 = vmatprep.subr.mxu0 0.0
        %1551 = vmatpush1.msra.mxu0 0.0
        %1552 = vmatprep.subr.mxu0 0.0
        %1553 = vmatpush1.msra.mxu0 0.0
        %1554 = vmatprep.subr.mxu0 0.0
        %1555 = vmatpush1.msra.mxu0 0.0
        %1556 = vmatprep.subr.mxu0 0.0
        %1557 = vmatpush1.msra.mxu0 0.0
        %1558 = vmatprep.subr.mxu0 0.0
        %1559 = vmatpush1.msra.mxu0 0.0
        %1560 = vmatprep.subr.mxu0 0.0
        %1561 = vmatpush1.msra.mxu0 0.0
        %1562 = vmatprep.subr.mxu0 0.0
        %1563 = vmatpush1.msra.mxu0 0.0
        %1564 = vmatprep.subr.mxu0 0.0
        %1565 = vmatpush1.msra.mxu0 0.0
        %1566 = vmatprep.subr.mxu0 0.0
        %1567 = vmatpush1.msra.mxu0 0.0
        %1568 = vmatprep.subr.mxu0 0.0
        %1569 = vmatpush1.msra.mxu0 0.0
        %1570 = vmatprep.subr.mxu0 0.0
        %1571 = vmatpush1.msra.mxu0 0.0
        %1572 = vmatprep.subr.mxu0 0.0
        %1573 = vmatpush1.msra.mxu0 0.0
        %1574 = vmatprep.subr.mxu0 0.0
        %1575 = vmatpush1.msra.mxu0 0.0
        %1576 = vmatprep.subr.mxu0 0.0
        %1577 = vmatpush1.msra.mxu0 0.0
        %1578 = vmatprep.subr.mxu0 0.0
        %1579 = vmatpush1.msra.mxu0 0.0
        %1580 = vmatprep.subr.mxu0 0.0
        %1581 = vmatpush1.msra.mxu0 0.0
        %1582 = vmatprep.subr.mxu0 0.0
        %1583 = vmatpush1.msra.mxu0 0.0
        %1584 = vmatprep.subr.mxu0 0.0
        %1585 = vmatpush1.msra.mxu0 0.0
        %1586 = vmatprep.subr.mxu0 0.0
        %1587 = vmatpush1.msra.mxu0 0.0
        %1588 = vmatprep.subr.mxu0 0.0
        %1589 = vmatpush1.msra.mxu0 0.0
        %1590 = vmatprep.mubr.f32.mxu0 0.0
        %1591 = vmatmul.mubr.f32.gmra.mrb[0].mxu0 %v1515
        %v1592 = vpop.f32.mrb[0].mxu0
        %v1593 = vadd.f32 0.0, %v1592
        %v1594 = vpop.f32.mrb[0].mxu0
        %v1595 = vadd.f32 0.0, %v1594
        %1596 = vmatprep.mubr.f32.mxu0 0.0
        %1597 = vmatmul.mubr.f32.gmra.mrb[0].mxu0 %v1518
        %v1598 = vpop.f32.mrb[0].mxu0
        %v1599 = vadd.f32 0.0, %v1598
        %v1600 = vpop.f32.mrb[0].mxu0
        %v1601 = vadd.f32 0.0, %v1600
        %1602 = vmatprep.mubr.f32.mxu0 0.0
        %1603 = vmatmul.mubr.f32.gmra.mrb[0].mxu0 %v1521
        %v1604 = vpop.f32.mrb[0].mxu0
        %v1605 = vadd.f32 0.0, %v1604
        %v1606 = vpop.f32.mrb[0].mxu0
        %v1607 = vadd.f32 0.0, %v1606
        %1608 = vmatprep.mubr.f32.mxu0 0.0
        %1609 = vmatmul.mubr.f32.gmra.mrb[0].mxu0 %v1524
        %v1610 = vpop.f32.mrb[0].mxu0
        %v1611 = vadd.f32 0.0, %v1610
        %v1612 = vpop.f32.mrb[0].mxu0
        %v1613 = vadd.f32 0.0, %v1612
        %1614 = vdwg.mxu0
        %v1616 = vsel %vm274, %v1326, 0
        %v1619 = vsel %vm274, %v1331, 0
        %v1622 = vsel %vm274, %v1336, 0
        %v1625 = vsel %vm274, %v1341, 0
        %1627 = vmatprep.subr.mxu0 %v416
        %1628 = vmatpush1.msra.mxu0 %v414
        %1629 = vmatprep.subr.mxu0 %v422
        %1630 = vmatpush1.msra.mxu0 %v420
        %1631 = vmatprep.subr.mxu0 %v428
        %1632 = vmatpush1.msra.mxu0 %v426
        %1633 = vmatprep.subr.mxu0 %v434
        %1634 = vmatpush1.msra.mxu0 %v432
        %1635 = vmatprep.subr.mxu0 0.0
        %1636 = vmatpush1.msra.mxu0 0.0
        %1637 = vmatprep.subr.mxu0 0.0
        %1638 = vmatpush1.msra.mxu0 0.0
        %1639 = vmatprep.subr.mxu0 0.0
        %1640 = vmatpush1.msra.mxu0 0.0
        %1641 = vmatprep.subr.mxu0 0.0
        %1642 = vmatpush1.msra.mxu0 0.0
        %1643 = vmatprep.subr.mxu0 0.0
        %1644 = vmatpush1.msra.mxu0 0.0
        %1645 = vmatprep.subr.mxu0 0.0
        %1646 = vmatpush1.msra.mxu0 0.0
        %1647 = vmatprep.subr.mxu0 0.0
        %1648 = vmatpush1.msra.mxu0 0.0
        %1649 = vmatprep.subr.mxu0 0.0
        %1650 = vmatpush1.msra.mxu0 0.0
        %1651 = vmatprep.subr.mxu0 0.0
        %1652 = vmatpush1.msra.mxu0 0.0
        %1653 = vmatprep.subr.mxu0 0.0
        %1654 = vmatpush1.msra.mxu0 0.0
        %1655 = vmatprep.subr.mxu0 0.0
        %1656 = vmatpush1.msra.mxu0 0.0
        %1657 = vmatprep.subr.mxu0 0.0
        %1658 = vmatpush1.msra.mxu0 0.0
        %1659 = vmatprep.subr.mxu0 0.0
        %1660 = vmatpush1.msra.mxu0 0.0
        %1661 = vmatprep.subr.mxu0 0.0
        %1662 = vmatpush1.msra.mxu0 0.0
        %1663 = vmatprep.subr.mxu0 0.0
        %1664 = vmatpush1.msra.mxu0 0.0
        %1665 = vmatprep.subr.mxu0 0.0
        %1666 = vmatpush1.msra.mxu0 0.0
        %1667 = vmatprep.subr.mxu0 0.0
        %1668 = vmatpush1.msra.mxu0 0.0
        %1669 = vmatprep.subr.mxu0 0.0
        %1670 = vmatpush1.msra.mxu0 0.0
        %1671 = vmatprep.subr.mxu0 0.0
        %1672 = vmatpush1.msra.mxu0 0.0
        %1673 = vmatprep.subr.mxu0 0.0
        %1674 = vmatpush1.msra.mxu0 0.0
        %1675 = vmatprep.subr.mxu0 0.0
        %1676 = vmatpush1.msra.mxu0 0.0
        %1677 = vmatprep.subr.mxu0 0.0
        %1678 = vmatpush1.msra.mxu0 0.0
        %1679 = vmatprep.subr.mxu0 0.0
        %1680 = vmatpush1.msra.mxu0 0.0
        %1681 = vmatprep.subr.mxu0 0.0
        %1682 = vmatpush1.msra.mxu0 0.0
        %1683 = vmatprep.subr.mxu0 0.0
        %1684 = vmatpush1.msra.mxu0 0.0
        %1685 = vmatprep.subr.mxu0 0.0
        %1686 = vmatpush1.msra.mxu0 0.0
        %1687 = vmatprep.subr.mxu0 0.0
        %1688 = vmatpush1.msra.mxu0 0.0
        %1689 = vmatprep.subr.mxu0 0.0
        %1690 = vmatpush1.msra.mxu0 0.0
        %1691 = vmatprep.mubr.f32.mxu0 0.0
        %1692 = vmatmul.mubr.f32.gmra.mrb[0].mxu0 %v1616
        %v1693 = vpop.f32.mrb[0].mxu0
        %v1694 = vadd.f32 0.0, %v1693
        %v1695 = vpop.f32.mrb[0].mxu0
        %v1696 = vadd.f32 0.0, %v1695
        %1697 = vmatprep.mubr.f32.mxu0 0.0
        %1698 = vmatmul.mubr.f32.gmra.mrb[0].mxu0 %v1619
        %v1699 = vpop.f32.mrb[0].mxu0
        %v1700 = vadd.f32 0.0, %v1699
        %v1701 = vpop.f32.mrb[0].mxu0
        %v1702 = vadd.f32 0.0, %v1701
        %1703 = vmatprep.mubr.f32.mxu0 0.0
        %1704 = vmatmul.mubr.f32.gmra.mrb[0].mxu0 %v1622
        %v1705 = vpop.f32.mrb[0].mxu0
        %v1706 = vadd.f32 0.0, %v1705
        %v1707 = vpop.f32.mrb[0].mxu0
        %v1708 = vadd.f32 0.0, %v1707
        %1709 = vmatprep.mubr.f32.mxu0 0.0
        %1710 = vmatmul.mubr.f32.gmra.mrb[0].mxu0 %v1625
        %v1711 = vpop.f32.mrb[0].mxu0
        %v1712 = vadd.f32 0.0, %v1711
        %v1713 = vpop.f32.mrb[0].mxu0
        %v1714 = vadd.f32 0.0, %v1713
        %1715 = vdwg.mxu0
        %v1717 = vsel %vm274, %v1411, 0
        %v1720 = vsel %vm274, %v1416, 0
        %v1723 = vsel %vm274, %v1421, 0
        %v1726 = vsel %vm274, %v1426, 0
        %1728 = vmatprep.subr.mxu0 %v440
        %1729 = vmatpush1.msra.mxu0 %v438
        %1730 = vmatprep.subr.mxu0 %v446
        %1731 = vmatpush1.msra.mxu0 %v444
        %1732 = vmatprep.subr.mxu0 %v452
        %1733 = vmatpush1.msra.mxu0 %v450
        %1734 = vmatprep.subr.mxu0 %v458
        %1735 = vmatpush1.msra.mxu0 %v456
        %1736 = vmatprep.subr.mxu0 0.0
        %1737 = vmatpush1.msra.mxu0 0.0
        %1738 = vmatprep.subr.mxu0 0.0
        %1739 = vmatpush1.msra.mxu0 0.0
        %1740 = vmatprep.subr.mxu0 0.0
        %1741 = vmatpush1.msra.mxu0 0.0
        %1742 = vmatprep.subr.mxu0 0.0
        %1743 = vmatpush1.msra.mxu0 0.0
        %1744 = vmatprep.subr.mxu0 0.0
        %1745 = vmatpush1.msra.mxu0 0.0
        %1746 = vmatprep.subr.mxu0 0.0
        %1747 = vmatpush1.msra.mxu0 0.0
        %1748 = vmatprep.subr.mxu0 0.0
        %1749 = vmatpush1.msra.mxu0 0.0
        %1750 = vmatprep.subr.mxu0 0.0
        %1751 = vmatpush1.msra.mxu0 0.0
        %1752 = vmatprep.subr.mxu0 0.0
        %1753 = vmatpush1.msra.mxu0 0.0
        %1754 = vmatprep.subr.mxu0 0.0
        %1755 = vmatpush1.msra.mxu0 0.0
        %1756 = vmatprep.subr.mxu0 0.0
        %1757 = vmatpush1.msra.mxu0 0.0
        %1758 = vmatprep.subr.mxu0 0.0
        %1759 = vmatpush1.msra.mxu0 0.0
        %1760 = vmatprep.subr.mxu0 0.0
        %1761 = vmatpush1.msra.mxu0 0.0
        %1762 = vmatprep.subr.mxu0 0.0
        %1763 = vmatpush1.msra.mxu0 0.0
        %1764 = vmatprep.subr.mxu0 0.0
        %1765 = vmatpush1.msra.mxu0 0.0
        %1766 = vmatprep.subr.mxu0 0.0
        %1767 = vmatpush1.msra.mxu0 0.0
        %1768 = vmatprep.subr.mxu0 0.0
        %1769 = vmatpush1.msra.mxu0 0.0
        %1770 = vmatprep.subr.mxu0 0.0
        %1771 = vmatpush1.msra.mxu0 0.0
        %1772 = vmatprep.subr.mxu0 0.0
        %1773 = vmatpush1.msra.mxu0 0.0
        %1774 = vmatprep.subr.mxu0 0.0
        %1775 = vmatpush1.msra.mxu0 0.0
        %1776 = vmatprep.subr.mxu0 0.0
        %1777 = vmatpush1.msra.mxu0 0.0
        %1778 = vmatprep.subr.mxu0 0.0
        %1779 = vmatpush1.msra.mxu0 0.0
        %1780 = vmatprep.subr.mxu0 0.0
        %1781 = vmatpush1.msra.mxu0 0.0
        %1782 = vmatprep.subr.mxu0 0.0
        %1783 = vmatpush1.msra.mxu0 0.0
        %1784 = vmatprep.subr.mxu0 0.0
        %1785 = vmatpush1.msra.mxu0 0.0
        %1786 = vmatprep.subr.mxu0 0.0
        %1787 = vmatpush1.msra.mxu0 0.0
        %1788 = vmatprep.subr.mxu0 0.0
        %1789 = vmatpush1.msra.mxu0 0.0
        %1790 = vmatprep.subr.mxu0 0.0
        %1791 = vmatpush1.msra.mxu0 0.0
        %1792 = vmatprep.mubr.f32.mxu0 0.0
        %1793 = vmatmul.mubr.f32.gmra.mrb[0].mxu0 %v1717
        %v1794 = vpop.f32.mrb[0].mxu0
        %v1795 = vadd.f32 0.0, %v1794
        %v1796 = vpop.f32.mrb[0].mxu0
        %v1797 = vadd.f32 0.0, %v1796
        %1798 = vmatprep.mubr.f32.mxu0 0.0
        %1799 = vmatmul.mubr.f32.gmra.mrb[0].mxu0 %v1720
        %v1800 = vpop.f32.mrb[0].mxu0
        %v1801 = vadd.f32 0.0, %v1800
        %v1802 = vpop.f32.mrb[0].mxu0
        %v1803 = vadd.f32 0.0, %v1802
        %1804 = vmatprep.mubr.f32.mxu0 0.0
        %1805 = vmatmul.mubr.f32.gmra.mrb[0].mxu0 %v1723
        %v1806 = vpop.f32.mrb[0].mxu0
        %v1807 = vadd.f32 0.0, %v1806
        %v1808 = vpop.f32.mrb[0].mxu0
        %v1809 = vadd.f32 0.0, %v1808
        %1810 = vmatprep.mubr.f32.mxu0 0.0
        %1811 = vmatmul.mubr.f32.gmra.mrb[0].mxu0 %v1726
        %v1812 = vpop.f32.mrb[0].mxu0
        %v1813 = vadd.f32 0.0, %v1812
        %v1814 = vpop.f32.mrb[0].mxu0
        %v1815 = vadd.f32 0.0, %v1814
        %1816 = vdwg.mxu0
        %v1818 = vsel %vm274, %v1496, 0
        %v1821 = vsel %vm274, %v1501, 0
        %v1824 = vsel %vm274, %v1506, 0
        %v1827 = vsel %vm274, %v1511, 0
        %1829 = vmatprep.subr.mxu0 %v464
        %1830 = vmatpush1.msra.mxu0 %v462
        %1831 = vmatprep.subr.mxu0 %v470
        %1832 = vmatpush1.msra.mxu0 %v468
        %1833 = vmatprep.subr.mxu0 %v476
        %1834 = vmatpush1.msra.mxu0 %v474
        %1835 = vmatprep.subr.mxu0 %v482
        %1836 = vmatpush1.msra.mxu0 %v480
        %1837 = vmatprep.subr.mxu0 0.0
        %1838 = vmatpush1.msra.mxu0 0.0
        %1839 = vmatprep.subr.mxu0 0.0
        %1840 = vmatpush1.msra.mxu0 0.0
        %1841 = vmatprep.subr.mxu0 0.0
        %1842 = vmatpush1.msra.mxu0 0.0
        %1843 = vmatprep.subr.mxu0 0.0
        %1844 = vmatpush1.msra.mxu0 0.0
        %1845 = vmatprep.subr.mxu0 0.0
        %1846 = vmatpush1.msra.mxu0 0.0
        %1847 = vmatprep.subr.mxu0 0.0
        %1848 = vmatpush1.msra.mxu0 0.0
        %1849 = vmatprep.subr.mxu0 0.0
        %1850 = vmatpush1.msra.mxu0 0.0
        %1851 = vmatprep.subr.mxu0 0.0
        %1852 = vmatpush1.msra.mxu0 0.0
        %1853 = vmatprep.subr.mxu0 0.0
        %1854 = vmatpush1.msra.mxu0 0.0
        %1855 = vmatprep.subr.mxu0 0.0
        %1856 = vmatpush1.msra.mxu0 0.0
        %1857 = vmatprep.subr.mxu0 0.0
        %1858 = vmatpush1.msra.mxu0 0.0
        %1859 = vmatprep.subr.mxu0 0.0
        %1860 = vmatpush1.msra.mxu0 0.0
        %1861 = vmatprep.subr.mxu0 0.0
        %1862 = vmatpush1.msra.mxu0 0.0
        %1863 = vmatprep.subr.mxu0 0.0
        %1864 = vmatpush1.msra.mxu0 0.0
        %1865 = vmatprep.subr.mxu0 0.0
        %1866 = vmatpush1.msra.mxu0 0.0
        %1867 = vmatprep.subr.mxu0 0.0
        %1868 = vmatpush1.msra.mxu0 0.0
        %1869 = vmatprep.subr.mxu0 0.0
        %1870 = vmatpush1.msra.mxu0 0.0
        %1871 = vmatprep.subr.mxu0 0.0
        %1872 = vmatpush1.msra.mxu0 0.0
        %1873 = vmatprep.subr.mxu0 0.0
        %1874 = vmatpush1.msra.mxu0 0.0
        %1875 = vmatprep.subr.mxu0 0.0
        %1876 = vmatpush1.msra.mxu0 0.0
        %1877 = vmatprep.subr.mxu0 0.0
        %1878 = vmatpush1.msra.mxu0 0.0
        %1879 = vmatprep.subr.mxu0 0.0
        %1880 = vmatpush1.msra.mxu0 0.0
        %1881 = vmatprep.subr.mxu0 0.0
        %1882 = vmatpush1.msra.mxu0 0.0
        %1883 = vmatprep.subr.mxu0 0.0
        %1884 = vmatpush1.msra.mxu0 0.0
        %1885 = vmatprep.subr.mxu0 0.0
        %1886 = vmatpush1.msra.mxu0 0.0
        %1887 = vmatprep.subr.mxu0 0.0
        %1888 = vmatpush1.msra.mxu0 0.0
        %1889 = vmatprep.subr.mxu0 0.0
        %1890 = vmatpush1.msra.mxu0 0.0
        %1891 = vmatprep.subr.mxu0 0.0
        %1892 = vmatpush1.msra.mxu0 0.0
        %1893 = vmatprep.mubr.f32.mxu0 0.0
        %1894 = vmatmul.mubr.f32.gmra.mrb[0].mxu0 %v1818
        %v1895 = vpop.f32.mrb[0].mxu0
        %v1896 = vadd.f32 0.0, %v1895
        %v1897 = vpop.f32.mrb[0].mxu0
        %v1898 = vadd.f32 0.0, %v1897
        %1899 = vmatprep.mubr.f32.mxu0 0.0
        %1900 = vmatmul.mubr.f32.gmra.mrb[0].mxu0 %v1821
        %v1901 = vpop.f32.mrb[0].mxu0
        %v1902 = vadd.f32 0.0, %v1901
        %v1903 = vpop.f32.mrb[0].mxu0
        %v1904 = vadd.f32 0.0, %v1903
        %1905 = vmatprep.mubr.f32.mxu0 0.0
        %1906 = vmatmul.mubr.f32.gmra.mrb[0].mxu0 %v1824
        %v1907 = vpop.f32.mrb[0].mxu0
        %v1908 = vadd.f32 0.0, %v1907
        %v1909 = vpop.f32.mrb[0].mxu0
        %v1910 = vadd.f32 0.0, %v1909
        %1911 = vmatprep.mubr.f32.mxu0 0.0
        %1912 = vmatmul.mubr.f32.gmra.mrb[0].mxu0 %v1827
        %v1913 = vpop.f32.mrb[0].mxu0
        %v1914 = vadd.f32 0.0, %v1913
        %v1915 = vpop.f32.mrb[0].mxu0
        %v1916 = vadd.f32 0.0, %v1915
        %1917 = vdwg.mxu0
        %v1918 = vld [vmem:[%s4] sm:$0xff]
        %v1919 = vld [vmem:[%s4 + $0x8] sm:$0xff]
        %v1920 = vld [vmem:[%s4 + $0x10] sm:$0xff]
        %v1921 = vld [vmem:[%s4 + $0x18] sm:$0xff]
        %v1922 = vld [vmem:[%s5] sm:$0xff]
        %v1923 = vld [vmem:[%s5 + $0x8] sm:$0xff]
        %v1924 = vld [vmem:[%s5 + $0x10] sm:$0xff]
        %v1925 = vld [vmem:[%s5 + $0x18] sm:$0xff]
        %1927 = vset.pattern.permute.xlu0 0
        %1928 = vperm.xlu0 %1927, %v1922
        %v1929 = vpop.permute.xlu0 %1928
        %1932 = vset.pattern.permute.xlu0 0
        %1933 = vperm.xlu0 %1932, %v1923
        %v1934 = vpop.permute.xlu0 %1933
        %1937 = vset.pattern.permute.xlu0 0
        %1938 = vperm.xlu0 %1937, %v1924
        %v1939 = vpop.permute.xlu0 %1938
        %1942 = vset.pattern.permute.xlu0 0
        %1943 = vperm.xlu0 %1942, %v1925
        %v1944 = vpop.permute.xlu0 %1943
        %1946 = vmatprep.subr.mxu0 %v1595
        %1947 = vmatpush1.msra.mxu0 %v1593
        %1948 = vmatprep.subr.mxu0 %v1601
        %1949 = vmatpush1.msra.mxu0 %v1599
        %1950 = vmatprep.subr.mxu0 %v1607
        %1951 = vmatpush1.msra.mxu0 %v1605
        %1952 = vmatprep.subr.mxu0 %v1613
        %1953 = vmatpush1.msra.mxu0 %v1611
        %1954 = vmatprep.subr.mxu0 %v1696
        %1955 = vmatpush1.msra.mxu0 %v1694
        %1956 = vmatprep.subr.mxu0 %v1702
        %1957 = vmatpush1.msra.mxu0 %v1700
        %1958 = vmatprep.subr.mxu0 %v1708
        %1959 = vmatpush1.msra.mxu0 %v1706
        %1960 = vmatprep.subr.mxu0 %v1714
        %1961 = vmatpush1.msra.mxu0 %v1712
        %1962 = vmatprep.subr.mxu0 %v1797
        %1963 = vmatpush1.msra.mxu0 %v1795
        %1964 = vmatprep.subr.mxu0 %v1803
        %1965 = vmatpush1.msra.mxu0 %v1801
        %1966 = vmatprep.subr.mxu0 %v1809
        %1967 = vmatpush1.msra.mxu0 %v1807
        %1968 = vmatprep.subr.mxu0 %v1815
        %1969 = vmatpush1.msra.mxu0 %v1813
        %1970 = vmatprep.subr.mxu0 %v1898
        %1971 = vmatpush1.msra.mxu0 %v1896
        %1972 = vmatprep.subr.mxu0 %v1904
        %1973 = vmatpush1.msra.mxu0 %v1902
        %1974 = vmatprep.subr.mxu0 %v1910
        %1975 = vmatpush1.msra.mxu0 %v1908
        %1976 = vmatprep.subr.mxu0 %v1916
        %1977 = vmatpush1.msra.mxu0 %v1914
        %1978 = vmatprep.subr.mxu0 0.0
        %1979 = vmatpush1.msra.mxu0 0.0
        %1980 = vmatprep.subr.mxu0 0.0
        %1981 = vmatpush1.msra.mxu0 0.0
        %1982 = vmatprep.subr.mxu0 0.0
        %1983 = vmatpush1.msra.mxu0 0.0
        %1984 = vmatprep.subr.mxu0 0.0
        %1985 = vmatpush1.msra.mxu0 0.0
        %1986 = vmatprep.subr.mxu0 0.0
        %1987 = vmatpush1.msra.mxu0 0.0
        %1988 = vmatprep.subr.mxu0 0.0
        %1989 = vmatpush1.msra.mxu0 0.0
        %1990 = vmatprep.subr.mxu0 0.0
        %1991 = vmatpush1.msra.mxu0 0.0
        %1992 = vmatprep.subr.mxu0 0.0
        %1993 = vmatpush1.msra.mxu0 0.0
        %1994 = vmatprep.subr.mxu0 0.0
        %1995 = vmatpush1.msra.mxu0 0.0
        %1996 = vmatprep.subr.mxu0 0.0
        %1997 = vmatpush1.msra.mxu0 0.0
        %1998 = vmatprep.subr.mxu0 0.0
        %1999 = vmatpush1.msra.mxu0 0.0
        %2000 = vmatprep.subr.mxu0 0.0
        %2001 = vmatpush1.msra.mxu0 0.0
        %2002 = vmatprep.subr.mxu0 0.0
        %2003 = vmatpush1.msra.mxu0 0.0
        %2004 = vmatprep.subr.mxu0 0.0
        %2005 = vmatpush1.msra.mxu0 0.0
        %2006 = vmatprep.subr.mxu0 0.0
        %2007 = vmatpush1.msra.mxu0 0.0
        %2008 = vmatprep.subr.mxu0 0.0
        %2009 = vmatpush1.msra.mxu0 0.0
        %2010 = vmatprep.mubr.f32.mxu0 0.0
        %2011 = vmatmul.mubr.f32.gmra.mrb[0].mxu0 %v1918
        %v2012 = vpop.f32.mrb[0].mxu0
        %v2013 = vadd.f32 %v1929, %v2012
        %v2014 = vpop.f32.mrb[0].mxu0
        %v2015 = vadd.f32 %v1929, %v2014
        %2016 = vmatprep.mubr.f32.mxu0 0.0
        %2017 = vmatmul.mubr.f32.gmra.mrb[0].mxu0 %v1919
        %v2018 = vpop.f32.mrb[0].mxu0
        %v2019 = vadd.f32 %v1934, %v2018
        %v2020 = vpop.f32.mrb[0].mxu0
        %v2021 = vadd.f32 %v1934, %v2020
        %2022 = vmatprep.mubr.f32.mxu0 0.0
        %2023 = vmatmul.mubr.f32.gmra.mrb[0].mxu0 %v1920
        %v2024 = vpop.f32.mrb[0].mxu0
        %v2025 = vadd.f32 %v1939, %v2024
        %v2026 = vpop.f32.mrb[0].mxu0
        %v2027 = vadd.f32 %v1939, %v2026
        %2028 = vmatprep.mubr.f32.mxu0 0.0
        %2029 = vmatmul.mubr.f32.gmra.mrb[0].mxu0 %v1921
        %v2030 = vpop.f32.mrb[0].mxu0
        %v2031 = vadd.f32 %v1944, %v2030
        %v2032 = vpop.f32.mrb[0].mxu0
        %v2033 = vadd.f32 %v1944, %v2032
        %2034 = vdwg.mxu0
        %2035 = vst [vmem:[%s244] sm:$0xff] %v2013
        %2036 = vst [vmem:[%s244 + $0x8] sm:$0xff] %v2015
        %2037 = vst [vmem:[%s244 + $0x10] sm:$0xff] %v2019
        %2038 = vst [vmem:[%s244 + $0x18] sm:$0xff] %v2021
        %2039 = vst [vmem:[%s244 + $0x20] sm:$0xff] %v2025
        %2040 = vst [vmem:[%s244 + $0x28] sm:$0xff] %v2027
        %2041 = vst [vmem:[%s244 + $0x30] sm:$0xff] %v2031
        %2042 = vst [vmem:[%s244 + $0x38] sm:$0xff] %v2033
        %s2043 = sand.u32 %s159, 1
        %s2044 = scalar_lea.sflag [#allocation3], %s2043
        %s2045 = sand.u32 %s159, 1
        %s2046 = smul.addr %s2045, 64
        %s2047 = scalar_lea.vmem [#allocation2], %s2046
        // Predicated region
        $region45: #{tpu_custom_call.1} parent=43 // pred_check
          %p2048 = pneg %p169
        $region46: #{tpu_custom_call.1} parent=43 // pred_check_branch
          %2050 = sbr.rel (%p2048) target = $region48
        $region47: #{tpu_custom_call.1} parent=43 // pred_region
          %s2052 = ssub.s32 1024, 1024
          %2053 = vsyncadd %s2044, %s2052
          %s2054 = smul.addr %s20, 8
          %s2055 = smul.addr %s2054, 128
          %s2056 = scalar_lea.hbm %s6, %s2055
          %s2057 = sshll.u32 %s2047, 4
          %s2058 = int_to_ptr.vmem [resolvable:$true] %s2057
          %2063 = dma.vmem_to_hbm [thread:$0]  %s2058, 1024, %s2056, %s2044, 256, 256, 16
        $region48: #{tpu_custom_call.1} parent=43 // pred_fallthru
          _
      $region44: #{tpu_custom_call.1} parent=5 // pred_fallthru
        _
      %p2064 = scmp.le.s32.totalorder 2, %s15
      // Predicated region
      $region49: #{tpu_custom_call.1} parent=5 // pred_check
        %p2065 = pneg %p2064
      $region50: #{tpu_custom_call.1} parent=5 // pred_check_branch
        %2067 = sbr.rel (%p2065) target = $region52
      $region51: #{tpu_custom_call.1} parent=5 // pred_region
        %s2068 = ssub.s32 %s15, 2
        // Predicated region
        $region53: #{tpu_custom_call.1} parent=51 // pred_check
          %p2069 = pneg %p175
        $region54: #{tpu_custom_call.1} parent=51 // pred_check_branch
          %2071 = sbr.rel (%p2069) target = $region56
        $region55: #{tpu_custom_call.1} parent=51 // pred_region
          %s2072 = sand.u32 %s160, 1
          %s2073 = scalar_lea.sflag [#allocation3], %s2072
          %s2074 = sand.u32 %s160, 1
          %s2075 = smul.addr %s2074, 64
          %s2076 = scalar_lea.vmem [#allocation2], %s2075
          %2077 = dma.done %s2073, 1024
        $region56: #{tpu_custom_call.1} parent=51 // pred_fallthru
          _
      $region52: #{tpu_custom_call.1} parent=5 // pred_fallthru
        _
    $region6: #{tpu_custom_call.1} parent=1 // loop_footer
      %s19 = sadd.s32 1, %s15
    $region7: #{tpu_custom_call.1} parent=1 // loop_footer_branch
      %14 = sbr.rel target = $region3
    $region8: #{tpu_custom_call.1} parent=1 // loop_exit
      _
    %2078 = vsyncpa [#allocation3], 1
    %s2079 = scalar_lea.sflag [#allocation3], 1
    %2080 = vsyncpa %s2079, 1

</llo_original>
